<compile_context>
chip_gen: v7x
topology: tpu7x:2x2x1
jax: 0.10.0
libtpu: 0.0.40
codegen_flags: <defaults>
</compile_context>

<pallas_src>
import functools

import jax
import jax.numpy as jnp
from jax import lax
from jax.experimental import pallas as pl
from jax.experimental.pallas import tpu as pltpu

BN_EPS = 1e-5
LANE = 128


def _round_up(x, m):
    return (x + m - 1) // m * m


def _row_tile(m, target=512):
    """Largest multiple-of-8 divisor of m that is <= target (and < m if possible)."""
    best = m
    for t in range(8, min(m - 1, target) + 1, 8):
        if m % t == 0:
            best = t
    return best


# --------------------- kernel 1: 2x2 max-pool + channel pad ------------------


def _pool_pad_kernel(x_ref, o_ref):
    # x_ref: (Hp, Wp, 2, Cin)  one H-parity slice, both W-parities.
    # o_ref: (Hp, Wp, CP)      pooled + channel-padded output, revisited over
    #                          the H-parity grid axis (arbitrary).
    cin = x_ref.shape[-1]
    m = jnp.max(x_ref[...], axis=2)          # max over the W-parity pair

    i = pl.program_id(1)

    @pl.when(i == 0)
    def _():
        o_ref[...] = jnp.zeros_like(o_ref)   # zero-initialise (incl. pad lanes)
        o_ref[:, :, :cin] = m

    @pl.when(i == 1)
    def _():
        o_ref[:, :, :cin] = jnp.maximum(o_ref[:, :, :cin], m)


def maxpool2x2_pad_channels(x_nhwc, c_padded):
    """2x2 max pool fused with zero-padding of channels up to c_padded."""
    N, H, W, C = x_nhwc.shape
    Hp, Wp = H // 2, W // 2
    # Free (contiguous) reshape: split H -> (Hp, 2) and W -> (Wp, 2).
    x6 = x_nhwc.reshape(N, Hp, 2, Wp, 2, C)
    return pl.pallas_call(
        _pool_pad_kernel,
        grid=(N, 2),
        in_specs=[pl.BlockSpec((None, Hp, None, Wp, 2, C),
                               lambda n, i: (n, 0, i, 0, 0, 0))],
        out_specs=pl.BlockSpec((None, Hp, Wp, c_padded),
                               lambda n, i: (n, 0, 0, 0)),
        out_shape=jax.ShapeDtypeStruct((N, Hp, Wp, c_padded), jnp.float32),
        compiler_params=pltpu.CompilerParams(
            dimension_semantics=("parallel", "arbitrary")),
    )(x6)


# ------------- kernel 2: 3x3 conv tap accumulation + BN partials -------------


def _conv_taps_kernel(x_ref, w_ref, y_ref, stat_ref):
    # x_ref:    (Wp+2, CP)       padded input row  h + ky          (f32)
    # w_ref:    (3, 3, CP, CoP)  resident conv weights             (bf16)
    # y_ref:    (Wp, CoP)        pre-BN conv output row, accumulated over ky
    # stat_ref: (2, CoP)         per-row [sum, sum-of-squares] of y
    ky = pl.program_id(2)
    wp = y_ref.shape[0]

    @pl.when(ky == 0)
    def _():
        y_ref[...] = jnp.zeros_like(y_ref)

    row = x_ref[...].astype(jnp.bfloat16)            # bf16 MXU operand
    wk = w_ref[ky]                                   # (3, CP, CoP), dynamic ky
    acc = jnp.zeros(y_ref.shape, jnp.float32)
    for kx in range(3):
        acc += jnp.dot(row[kx:kx + wp, :], wk[kx],
                       preferred_element_type=jnp.float32)
    y_ref[...] += acc

    @pl.when(ky == pl.num_programs(2) - 1)
    def _():
        y = y_ref[...]
        s = jnp.sum(y, axis=0, keepdims=True)        # (1, CoP)
        ss = jnp.sum(y * y, axis=0, keepdims=True)   # (1, CoP)
        stat_ref[...] = jnp.concatenate([s, ss], axis=0)


# ----------------- kernel 3: folded BN scale/shift + ReLU --------------------


def _bn_relu_kernel(y_ref, scale_ref, shift_ref, o_ref):
    # y_ref: (TM, CoP) f32; scale/shift: (1, CoP); one FMA + ReLU per element.
    o_ref[...] = jnp.maximum(y_ref[...] * scale_ref[...] + shift_ref[...], 0.0)


# ------------------------------- conv wrapper --------------------------------


def conv3x3_bn_relu(x_cp, w_p, gamma_p, beta_p):
    """Conv2d(3x3, pad=1, no bias) + BatchNorm2d(batch stats) + ReLU.

    x_cp: (N, Hp, Wp, CP) NHWC activations, channels already lane-padded.
    w_p:  (3, 3, CP, CoP) bf16 weights (zero-padded).
    """
    N, Hp, Wp, CP = x_cp.shape
    CoP = w_p.shape[-1]

    # Spatial zero pad (glue, ~1x HBM pass over the activation).
    xpad = jnp.pad(x_cp, ((0, 0), (1, 1), (1, 1), (0, 0)))

    flops = 2 * N * Hp * Wp * 9 * CP * CoP
    bytes_acc = (3 * xpad.size * 4 + w_p.size * 2
                 + N * Hp * Wp * CoP * 4 + N * Hp * 2 * CoP * 4)

    y, stats = pl.pallas_call(
        _conv_taps_kernel,
        grid=(N, Hp, 3),
        in_specs=[
            pl.BlockSpec((None, None, Wp + 2, CP),
                         lambda n, h, ky: (n, h + ky, 0, 0)),
            pl.BlockSpec((3, 3, CP, CoP), lambda n, h, ky: (0, 0, 0, 0)),
        ],
        out_specs=(
            pl.BlockSpec((None, None, Wp, CoP), lambda n, h, ky: (n, h, 0, 0)),
            pl.BlockSpec((None, None, 2, CoP), lambda n, h, ky: (n, h, 0, 0)),
        ),
        out_shape=(
            jax.ShapeDtypeStruct((N, Hp, Wp, CoP), jnp.float32),
            jax.ShapeDtypeStruct((N, Hp, 2, CoP), jnp.float32),
        ),
        compiler_params=pltpu.CompilerParams(
            dimension_semantics=("parallel", "parallel", "arbitrary")),
        cost_estimate=pl.CostEstimate(flops=flops, transcendentals=0,
                                      bytes_accessed=bytes_acc),
    )(xpad, w_p)

    # Tiny per-channel reduction + scale/shift folding (glue: CoP-sized math).
    tot = jnp.sum(stats, axis=(0, 1))                     # (2, CoP)
    m_rows = N * Hp * Wp
    mean = tot[0] / m_rows
    var = jnp.maximum(tot[1] / m_rows - mean * mean, 0.0)  # biased (train mode)
    scale = gamma_p * lax.rsqrt(var + BN_EPS)
    shift = beta_p - mean * scale

    # Pass 2: lane-dense tiled scale/shift + ReLU.
    M = N * Hp * Wp
    y2 = y.reshape(M, CoP)
    tm = _row_tile(M)
    out = pl.pallas_call(
        _bn_relu_kernel,
        grid=(M // tm,),
        in_specs=[
            pl.BlockSpec((tm, CoP), lambda i: (i, 0)),
            pl.BlockSpec((1, CoP), lambda i: (0, 0)),
            pl.BlockSpec((1, CoP), lambda i: (0, 0)),
        ],
        out_specs=pl.BlockSpec((tm, CoP), lambda i: (i, 0)),
        out_shape=jax.ShapeDtypeStruct((M, CoP), jnp.float32),
        compiler_params=pltpu.CompilerParams(
            dimension_semantics=("parallel",)),
    )(y2, scale.reshape(1, CoP), shift.reshape(1, CoP))
    return out.reshape(N, Hp, Wp, CoP)


# ------------------------------ module forward -------------------------------


def prepare_params(w1, g1, b1, w2, g2, b2, lane=LANE):
    """Pad channels up to lane multiples; cast conv weights to bf16."""
    _, _, cin, cmid = w1.shape
    cout = w2.shape[-1]
    cin_p = _round_up(cin, lane)
    cmid_p = _round_up(cmid, lane)
    cout_p = _round_up(cout, lane)
    w1p = jnp.zeros((3, 3, cin_p, cmid_p), jnp.bfloat16)
    w1p = w1p.at[:, :, :cin, :cmid].set(w1.astype(jnp.bfloat16))
    w2p = jnp.zeros((3, 3, cmid_p, cout_p), jnp.bfloat16)
    w2p = w2p.at[:, :, :cmid, :cout].set(w2.astype(jnp.bfloat16))
    g1p = jnp.zeros((cmid_p,), jnp.float32).at[:cmid].set(g1)
    b1p = jnp.zeros((cmid_p,), jnp.float32).at[:cmid].set(b1)
    g2p = jnp.zeros((cout_p,), jnp.float32).at[:cout].set(g2)
    b2p = jnp.zeros((cout_p,), jnp.float32).at[:cout].set(b2)
    return {"w1p": w1p, "g1p": g1p, "b1p": b1p,
            "w2p": w2p, "g2p": g2p, "b2p": b2p}


@functools.partial(jax.jit, static_argnames=("cout",))
def down_forward(x_nchw, params, *, cout):
    # layout: NCHW in/out (PyTorch convention); internal compute NHWC,
    # channels padded to the 128-lane axis.
    x = jnp.transpose(x_nchw, (0, 2, 3, 1)).astype(jnp.float32)
    cin_p = params["w1p"].shape[2]
    x = maxpool2x2_pad_channels(x, cin_p)
    x = conv3x3_bn_relu(x, params["w1p"], params["g1p"], params["b1p"])
    x = conv3x3_bn_relu(x, params["w2p"], params["g2p"], params["b2p"])
    out = x[..., :cout]
    return jnp.transpose(out, (0, 3, 1, 2))


# ----------------------------- pure-JAX reference ----------------------------


def _ref_conv_bn_relu(x, w, gamma, beta):
    y = lax.conv_general_dilated(
        x.astype(jnp.bfloat16), w.astype(jnp.bfloat16),
        window_strides=(1, 1), padding=((1, 1), (1, 1)),
        dimension_numbers=("NHWC", "HWIO", "NHWC"),
        preferred_element_type=jnp.float32)
    mean = jnp.mean(y, axis=(0, 1, 2), keepdims=True)
    var = jnp.mean((y - mean) ** 2, axis=(0, 1, 2), keepdims=True)
    y = (y - mean) * lax.rsqrt(var + BN_EPS) * gamma + beta
    return jnp.maximum(y, 0.0)


def _ref_down(x_nchw, w1, g1, b1, w2, g2, b2):
    x = jnp.transpose(x_nchw, (0, 2, 3, 1)).astype(jnp.float32)
    N, H, W, C = x.shape
    x = jnp.max(x.reshape(N, H // 2, 2, W // 2, 2, C), axis=(2, 4))
    x = _ref_conv_bn_relu(x, w1, g1, b1)
    x = _ref_conv_bn_relu(x, w2, g2, b2)
    return jnp.transpose(x, (0, 3, 1, 2))


# ------------------------------------ main -----------------------------------


if __name__ == "__main__":
    key = jax.random.PRNGKey(0)
    k_x, k_w1, k_w2, k_g1, k_b1, k_g2, k_b2 = jax.random.split(key, 7)

    N, Cin, H, W = 2, 4, 16, 16
    Cout = 8  # mid_channels == out_channels (DoubleConv default)

    x = jax.random.normal(k_x, (N, Cin, H, W), dtype=jnp.float32)

    # Conv weights stored HWIO (ky, kx, cin, cout); same correlation semantics
    # as PyTorch's OIHW Conv2d with padding=1, bias=False.
    w1 = jax.random.normal(k_w1, (3, 3, Cin, Cout), jnp.float32) * 0.1
    g1 = jax.random.normal(k_g1, (Cout,), jnp.float32) * 0.1 + 1.0
    b1 = jax.random.normal(k_b1, (Cout,), jnp.float32) * 0.1
    w2 = jax.random.normal(k_w2, (3, 3, Cout, Cout), jnp.float32) * 0.1
    g2 = jax.random.normal(k_g2, (Cout,), jnp.float32) * 0.1 + 1.0
    b2 = jax.random.normal(k_b2, (Cout,), jnp.float32) * 0.1

    params = prepare_params(w1, g1, b1, w2, g2, b2)

    out = jax.block_until_ready(down_forward(x, params, cout=Cout))
    assert out.shape == (N, Cout, H // 2, W // 2), out.shape

    ref = jax.block_until_ready(_ref_down(x, w1, g1, b1, w2, g2, b2))
    max_err = float(jnp.max(jnp.abs(out - ref)))
    assert jnp.allclose(out, ref, atol=5e-3, rtol=5e-3), max_err

    print("KERNEL_OK")
</pallas_src>

<mosaic_0001>
module attributes {stable_mosaic.version = 11 : i64} {
  func.func @_pool_pad_kernel(%arg0: i32, %arg1: i32, %arg2: memref<1x8x1x8x2x4xf32, #tpu.memory_space<vmem>>, %arg3: memref<1x8x8x128xf32, #tpu.memory_space<vmem>>) attributes {dimension_semantics = [#tpu.dimension_semantics<parallel>, #tpu.dimension_semantics<arbitrary>], iteration_bounds = array<i64: 2, 2>, scalar_prefetch = 0 : i64, scratch_operands = 0 : i64, tpu.core_type = #tpu.core_type<tc>, window_params = [{transform_indices = @transform_0, window_bounds = array<i64: 1, 8, 1, 8, 2, 4>}, {transform_indices = @transform_1, window_bounds = array<i64: 1, 8, 8, 128>}]} {
    %c0 = arith.constant 0 : index
    %c0_0 = arith.constant 0 : index
    %c0_1 = arith.constant 0 : index
    %c0_2 = arith.constant 0 : index
    %c0_3 = arith.constant 0 : index
    %c0_4 = arith.constant 0 : index
    %0 = vector.load %arg2[%c0, %c0_0, %c0_1, %c0_2, %c0_3, %c0_4] : memref<1x8x1x8x2x4xf32, #tpu.memory_space<vmem>>, vector<1x8x1x8x2x4xf32>
    %1 = vector.shape_cast %0 : vector<1x8x1x8x2x4xf32> to vector<8x8x2x4xf32>
    %cst = arith.constant dense<0xFF800000> : vector<8x8x4xf32>
    %2 = vector.multi_reduction <maximumf>, %1, %cst [2] : vector<8x8x2x4xf32> to vector<8x8x4xf32>
    %c0_i32 = arith.constant 0 : i32
    %3 = arith.cmpi eq, %arg1, %c0_i32 : i32
    %4 = arith.extui %3 : i1 to i32
    %c0_i32_5 = arith.constant 0 : i32
    %5 = arith.cmpi ne, %4, %c0_i32_5 : i32
    scf.if %5 {
      %cst_7 = arith.constant 0.000000e+00 : f32
      %9 = vector.broadcast %cst_7 : f32 to vector<8x8x128xf32>
      %c0_8 = arith.constant 0 : index
      %c0_9 = arith.constant 0 : index
      %c0_10 = arith.constant 0 : index
      %c0_11 = arith.constant 0 : index
      %10 = vector.load %arg3[%c0_8, %c0_9, %c0_10, %c0_11] : memref<1x8x8x128xf32, #tpu.memory_space<vmem>>, vector<1x8x8x128xf32>
      %11 = vector.shape_cast %10 : vector<1x8x8x128xf32> to vector<8x8x128xf32>
      %12 = vector.shape_cast %9 : vector<8x8x128xf32> to vector<1x8x8x128xf32>
      tpu.vector_store %arg3[%c0_8, %c0_9, %c0_10, %c0_11], %12 {strides = array<i32>} : memref<1x8x8x128xf32, #tpu.memory_space<vmem>>, vector<1x8x8x128xf32>,
      %c0_12 = arith.constant 0 : index
      %c0_13 = arith.constant 0 : index
      %c0_14 = arith.constant 0 : index
      %c0_15 = arith.constant 0 : index
      %13 = vector.load %arg3[%c0_12, %c0_13, %c0_14, %c0_15] : memref<1x8x8x128xf32, #tpu.memory_space<vmem>>, vector<1x8x8x4xf32>
      %14 = vector.shape_cast %13 : vector<1x8x8x4xf32> to vector<8x8x4xf32>
      %15 = vector.shape_cast %2 : vector<8x8x4xf32> to vector<1x8x8x4xf32>
      tpu.vector_store %arg3[%c0_12, %c0_13, %c0_14, %c0_15], %15 {strides = array<i32>} : memref<1x8x8x128xf32, #tpu.memory_space<vmem>>, vector<1x8x8x4xf32>,
    } else {
    }
    %c1_i32 = arith.constant 1 : i32
    %6 = arith.cmpi eq, %arg1, %c1_i32 : i32
    %7 = arith.extui %6 : i1 to i32
    %c0_i32_6 = arith.constant 0 : i32
    %8 = arith.cmpi ne, %7, %c0_i32_6 : i32
    scf.if %8 {
      %c0_7 = arith.constant 0 : index
      %c0_8 = arith.constant 0 : index
      %c0_9 = arith.constant 0 : index
      %c0_10 = arith.constant 0 : index
      %9 = vector.load %arg3[%c0_7, %c0_8, %c0_9, %c0_10] : memref<1x8x8x128xf32, #tpu.memory_space<vmem>>, vector<1x8x8x4xf32>
      %10 = vector.shape_cast %9 : vector<1x8x8x4xf32> to vector<8x8x4xf32>
      %11 = arith.maximumf %10, %2 : vector<8x8x4xf32>
      %c0_11 = arith.constant 0 : index
      %c0_12 = arith.constant 0 : index
      %c0_13 = arith.constant 0 : index
      %c0_14 = arith.constant 0 : index
      %12 = vector.load %arg3[%c0_11, %c0_12, %c0_13, %c0_14] : memref<1x8x8x128xf32, #tpu.memory_space<vmem>>, vector<1x8x8x4xf32>
      %13 = vector.shape_cast %12 : vector<1x8x8x4xf32> to vector<8x8x4xf32>
      %14 = vector.shape_cast %11 : vector<8x8x4xf32> to vector<1x8x8x4xf32>
      tpu.vector_store %arg3[%c0_11, %c0_12, %c0_13, %c0_14], %14 {strides = array<i32>} : memref<1x8x8x128xf32, #tpu.memory_space<vmem>>, vector<1x8x8x4xf32>,
    } else {
    }
    return
  }
  func.func @transform_0(%arg0: i32, %arg1: i32) -> (i32, i32, i32, i32, i32, i32) {
    %c0_i32 = arith.constant 0 : i32
    %c0_i32_0 = arith.constant 0 : i32
    %c0_i32_1 = arith.constant 0 : i32
    %c0_i32_2 = arith.constant 0 : i32
    %c0_i32_3 = arith.constant 0 : i32
    return %arg0, %c0_i32, %arg1, %c0_i32_0, %c0_i32_1, %c0_i32_2 : i32, i32, i32, i32, i32, i32
  }
  func.func @transform_1(%arg0: i32, %arg1: i32) -> (i32, i32, i32, i32) {
    %c0_i32 = arith.constant 0 : i32
    %c0_i32_0 = arith.constant 0 : i32
    %c0_i32_1 = arith.constant 0 : i32
    %c0_i32_2 = arith.constant 0 : i32
    return %arg0, %c0_i32, %c0_i32_0, %c0_i32_1 : i32, i32, i32, i32
  }
}

module attributes {stable_mosaic.version = 11 : i64} {
  func.func @_conv_taps_kernel(%arg0: i32, %arg1: i32, %arg2: i32, %arg3: memref<1x1x10x128xf32, #tpu.memory_space<vmem>>, %arg4: memref<3x3x128x128xbf16, #tpu.memory_space<vmem>>, %arg5: memref<1x1x8x128xf32, #tpu.memory_space<vmem>>, %arg6: memref<1x1x2x128xf32, #tpu.memory_space<vmem>>) attributes {dimension_semantics = [#tpu.dimension_semantics<parallel>, #tpu.dimension_semantics<parallel>, #tpu.dimension_semantics<arbitrary>], iteration_bounds = array<i64: 2, 8, 3>, scalar_prefetch = 0 : i64, scratch_operands = 0 : i64, tpu.core_type = #tpu.core_type<tc>, window_params = [{transform_indices = @transform_0, window_bounds = array<i64: 1, 1, 10, 128>}, {pipeline_mode = #tpu.pipeline_mode<synchronous>, transform_indices = @transform_1, window_bounds = array<i64: 3, 3, 128, 128>}, {transform_indices = @transform_2, window_bounds = array<i64: 1, 1, 8, 128>}, {transform_indices = @transform_3, window_bounds = array<i64: 1, 1, 2, 128>}]} {
    %c0_i32 = arith.constant 0 : i32
    %0 = arith.cmpi eq, %arg2, %c0_i32 : i32
    %1 = arith.extui %0 : i1 to i32
    %c0_i32_0 = arith.constant 0 : i32
    %2 = arith.cmpi ne, %1, %c0_i32_0 : i32
    scf.if %2 {
      %cst_19 = arith.constant 0.000000e+00 : f32
      %34 = vector.broadcast %cst_19 : f32 to vector<8x128xf32>
      %c0_20 = arith.constant 0 : index
      %c0_21 = arith.constant 0 : index
      %c0_22 = arith.constant 0 : index
      %c0_23 = arith.constant 0 : index
      %35 = vector.load %arg5[%c0_20, %c0_21, %c0_22, %c0_23] : memref<1x1x8x128xf32, #tpu.memory_space<vmem>>, vector<1x1x8x128xf32>
      %36 = vector.shape_cast %35 : vector<1x1x8x128xf32> to vector<8x128xf32>
      %37 = vector.shape_cast %34 : vector<8x128xf32> to vector<1x1x8x128xf32>
      tpu.vector_store %arg5[%c0_20, %c0_21, %c0_22, %c0_23], %37 {strides = array<i32>} : memref<1x1x8x128xf32, #tpu.memory_space<vmem>>, vector<1x1x8x128xf32>,
    } else {
    }
    %c0 = arith.constant 0 : index
    %c0_1 = arith.constant 0 : index
    %c0_2 = arith.constant 0 : index
    %c0_3 = arith.constant 0 : index
    %3 = vector.load %arg3[%c0, %c0_1, %c0_2, %c0_3] : memref<1x1x10x128xf32, #tpu.memory_space<vmem>>, vector<1x1x10x128xf32>
    %4 = vector.shape_cast %3 : vector<1x1x10x128xf32> to vector<10x128xf32>
    %5 = arith.truncf %4 : vector<10x128xf32> to vector<10x128xbf16>
    %6 = arith.index_cast %arg2 : i32 to index
    %c0_4 = arith.constant 0 : index
    %c0_5 = arith.constant 0 : index
    %c0_6 = arith.constant 0 : index
    %7 = vector.load %arg4[%6, %c0_4, %c0_5, %c0_6] : memref<3x3x128x128xbf16, #tpu.memory_space<vmem>>, vector<1x3x128x128xbf16>
    %8 = vector.shape_cast %7 : vector<1x3x128x128xbf16> to vector<3x128x128xbf16>
    %cst = arith.constant 0.000000e+00 : f32
    %9 = vector.broadcast %cst : f32 to vector<8x128xf32>
    %10 = vector.extract_strided_slice %5 {offsets = [0, 0], sizes = [8, 128], strides = [1, 1]} : vector<10x128xbf16> to vector<8x128xbf16>
    %11 = vector.extract_strided_slice %8 {offsets = [0, 0, 0], sizes = [1, 128, 128], strides = [1, 1, 1]} : vector<3x128x128xbf16> to vector<1x128x128xbf16>
    %12 = vector.shape_cast %11 : vector<1x128x128xbf16> to vector<128x128xbf16>
    %cst_7 = arith.constant dense<0.000000e+00> : vector<8x128xf32>
    %13 = tpu.matmul %10, %12, %cst_7 {dimension_numbers = #tpu.dot_dimension_numbers<[1], [0], [0], [1], [0, 0, 1, 1], [], []>} : vector<8x128xbf16>, vector<128x128xbf16>, vector<8x128xf32> -> vector<8x128xf32>
    %14 = arith.addf %9, %13 : vector<8x128xf32>
    %15 = vector.extract_strided_slice %5 {offsets = [1, 0], sizes = [8, 128], strides = [1, 1]} : vector<10x128xbf16> to vector<8x128xbf16>
    %16 = vector.extract_strided_slice %8 {offsets = [1, 0, 0], sizes = [1, 128, 128], strides = [1, 1, 1]} : vector<3x128x128xbf16> to vector<1x128x128xbf16>
    %17 = vector.shape_cast %16 : vector<1x128x128xbf16> to vector<128x128xbf16>
    %cst_8 = arith.constant dense<0.000000e+00> : vector<8x128xf32>
    %18 = tpu.matmul %15, %17, %cst_8 {dimension_numbers = #tpu.dot_dimension_numbers<[1], [0], [0], [1], [0, 0, 1, 1], [], []>} : vector<8x128xbf16>, vector<128x128xbf16>, vector<8x128xf32> -> vector<8x128xf32>
    %19 = arith.addf %14, %18 : vector<8x128xf32>
    %20 = vector.extract_strided_slice %5 {offsets = [2, 0], sizes = [8, 128], strides = [1, 1]} : vector<10x128xbf16> to vector<8x128xbf16>
    %21 = vector.extract_strided_slice %8 {offsets = [2, 0, 0], sizes = [1, 128, 128], strides = [1, 1, 1]} : vector<3x128x128xbf16> to vector<1x128x128xbf16>
    %22 = vector.shape_cast %21 : vector<1x128x128xbf16> to vector<128x128xbf16>
    %cst_9 = arith.constant dense<0.000000e+00> : vector<8x128xf32>
    %23 = tpu.matmul %20, %22, %cst_9 {dimension_numbers = #tpu.dot_dimension_numbers<[1], [0], [0], [1], [0, 0, 1, 1], [], []>} : vector<8x128xbf16>, vector<128x128xbf16>, vector<8x128xf32> -> vector<8x128xf32>
    %24 = arith.addf %19, %23 : vector<8x128xf32>
    %c0_10 = arith.constant 0 : index
    %c0_11 = arith.constant 0 : index
    %c0_12 = arith.constant 0 : index
    %c0_13 = arith.constant 0 : index
    %25 = vector.load %arg5[%c0_10, %c0_11, %c0_12, %c0_13] : memref<1x1x8x128xf32, #tpu.memory_space<vmem>>, vector<1x1x8x128xf32>
    %26 = vector.shape_cast %25 : vector<1x1x8x128xf32> to vector<8x128xf32>
    %27 = arith.addf %26, %24 : vector<8x128xf32>
    %c0_14 = arith.constant 0 : index
    %c0_15 = arith.constant 0 : index
    %c0_16 = arith.constant 0 : index
    %c0_17 = arith.constant 0 : index
    %28 = vector.load %arg5[%c0_14, %c0_15, %c0_16, %c0_17] : memref<1x1x8x128xf32, #tpu.memory_space<vmem>>, vector<1x1x8x128xf32>
    %29 = vector.shape_cast %28 : vector<1x1x8x128xf32> to vector<8x128xf32>
    %30 = vector.shape_cast %27 : vector<8x128xf32> to vector<1x1x8x128xf32>
    tpu.vector_store %arg5[%c0_14, %c0_15, %c0_16, %c0_17], %30 {strides = array<i32>} : memref<1x1x8x128xf32, #tpu.memory_space<vmem>>, vector<1x1x8x128xf32>,
    %c2_i32 = arith.constant 2 : i32
    %31 = arith.cmpi eq, %arg2, %c2_i32 : i32
    %32 = arith.extui %31 : i1 to i32
    %c0_i32_18 = arith.constant 0 : i32
    %33 = arith.cmpi ne, %32, %c0_i32_18 : i32
    scf.if %33 {
      %c0_19 = arith.constant 0 : index
      %c0_20 = arith.constant 0 : index
      %c0_21 = arith.constant 0 : index
      %c0_22 = arith.constant 0 : index
      %34 = vector.load %arg5[%c0_19, %c0_20, %c0_21, %c0_22] : memref<1x1x8x128xf32, #tpu.memory_space<vmem>>, vector<1x1x8x128xf32>
      %35 = vector.shape_cast %34 : vector<1x1x8x128xf32> to vector<8x128xf32>
      %cst_23 = arith.constant dense<0.000000e+00> : vector<128xf32>
      %36 = vector.multi_reduction <add>, %35, %cst_23 [0] : vector<8x128xf32> to vector<128xf32>
      %37 = vector.shape_cast %36 : vector<128xf32> to vector<1x128xf32>
      %38 = arith.mulf %35, %35 : vector<8x128xf32>
      %cst_24 = arith.constant dense<0.000000e+00> : vector<128xf32>
      %39 = vector.multi_reduction <add>, %38, %cst_24 [0] : vector<8x128xf32> to vector<128xf32>
      %40 = vector.shape_cast %39 : vector<128xf32> to vector<1x128xf32>
      %41 = tpu.concatenate %37, %40 in 0 : vector<1x128xf32>, vector<1x128xf32> -> vector<2x128xf32>
      %c0_25 = arith.constant 0 : index
      %c0_26 = arith.constant 0 : index
      %c0_27 = arith.constant 0 : index
      %c0_28 = arith.constant 0 : index
      %42 = vector.load %arg6[%c0_25, %c0_26, %c0_27, %c0_28] : memref<1x1x2x128xf32, #tpu.memory_space<vmem>>, vector<1x1x2x128xf32>
      %43 = vector.shape_cast %42 : vector<1x1x2x128xf32> to vector<2x128xf32>
      %44 = vector.shape_cast %41 : vector<2x128xf32> to vector<1x1x2x128xf32>
      tpu.vector_store %arg6[%c0_25, %c0_26, %c0_27, %c0_28], %44 {strides = array<i32>} : memref<1x1x2x128xf32, #tpu.memory_space<vmem>>, vector<1x1x2x128xf32>,
    } else {
    }
    return
  }
  func.func @transform_0(%arg0: i32, %arg1: i32, %arg2: i32) -> (i32, i32, i32, i32) {
    %0 = arith.addi %arg1, %arg2 : i32
    %c0_i32 = arith.constant 0 : i32
    %c0_i32_0 = arith.constant 0 : i32
    %c0_i32_1 = arith.constant 0 : i32
    return %arg0, %0, %c0_i32, %c0_i32_0 : i32, i32, i32, i32
  }
  func.func @transform_1(%arg0: i32, %arg1: i32, %arg2: i32) -> (i32, i32, i32, i32) {
    %c0_i32 = arith.constant 0 : i32
    %c0_i32_0 = arith.constant 0 : i32
    %c0_i32_1 = arith.constant 0 : i32
    %c0_i32_2 = arith.constant 0 : i32
    %c0_i32_3 = arith.constant 0 : i32
    return %c0_i32, %c0_i32_0, %c0_i32_1, %c0_i32_2 : i32, i32, i32, i32
  }
  func.func @transform_2(%arg0: i32, %arg1: i32, %arg2: i32) -> (i32, i32, i32, i32) {
    %c0_i32 = arith.constant 0 : i32
    %c0_i32_0 = arith.constant 0 : i32
    %c0_i32_1 = arith.constant 0 : i32
    return %arg0, %arg1, %c0_i32, %c0_i32_0 : i32, i32, i32, i32
  }
  func.func @transform_3(%arg0: i32, %arg1: i32, %arg2: i32) -> (i32, i32, i32, i32) {
    %c0_i32 = arith.constant 0 : i32
    %c0_i32_0 = arith.constant 0 : i32
    %c0_i32_1 = arith.constant 0 : i32
    return %arg0, %arg1, %c0_i32, %c0_i32_0 : i32, i32, i32, i32
  }
}

module attributes {stable_mosaic.version = 11 : i64} {
  func.func @_bn_relu_kernel(%arg0: i32, %arg1: memref<64x128xf32, #tpu.memory_space<vmem>>, %arg2: memref<1x128xf32, #tpu.memory_space<vmem>>, %arg3: memref<1x128xf32, #tpu.memory_space<vmem>>, %arg4: memref<64x128xf32, #tpu.memory_space<vmem>>) attributes {dimension_semantics = [#tpu.dimension_semantics<parallel>], iteration_bounds = array<i64: 2>, scalar_prefetch = 0 : i64, scratch_operands = 0 : i64, tpu.core_type = #tpu.core_type<tc>, window_params = [{transform_indices = @transform_0, window_bounds = array<i64: 64, 128>}, {pipeline_mode = #tpu.pipeline_mode<synchronous>, transform_indices = @transform_1, window_bounds = array<i64: 1, 128>}, {pipeline_mode = #tpu.pipeline_mode<synchronous>, transform_indices = @transform_2, window_bounds = array<i64: 1, 128>}, {transform_indices = @transform_3, window_bounds = array<i64: 64, 128>}]} {
    %c0 = arith.constant 0 : index
    %c0_0 = arith.constant 0 : index
    %0 = vector.load %arg1[%c0, %c0_0] : memref<64x128xf32, #tpu.memory_space<vmem>>, vector<64x128xf32>
    %c0_1 = arith.constant 0 : index
    %c0_2 = arith.constant 0 : index
    %1 = vector.load %arg2[%c0_1, %c0_2] : memref<1x128xf32, #tpu.memory_space<vmem>>, vector<1x128xf32>
    %2 = vector.broadcast %1 : vector<1x128xf32> to vector<64x128xf32>
    %3 = arith.mulf %0, %2 : vector<64x128xf32>
    %c0_3 = arith.constant 0 : index
    %c0_4 = arith.constant 0 : index
    %4 = vector.load %arg3[%c0_3, %c0_4] : memref<1x128xf32, #tpu.memory_space<vmem>>, vector<1x128xf32>
    %5 = vector.broadcast %4 : vector<1x128xf32> to vector<64x128xf32>
    %6 = arith.addf %3, %5 : vector<64x128xf32>
    %cst = arith.constant 0.000000e+00 : f32
    %7 = vector.broadcast %cst : f32 to vector<64x128xf32>
    %8 = arith.maximumf %6, %7 : vector<64x128xf32>
    %c0_5 = arith.constant 0 : index
    %c0_6 = arith.constant 0 : index
    %9 = vector.load %arg4[%c0_5, %c0_6] : memref<64x128xf32, #tpu.memory_space<vmem>>, vector<64x128xf32>
    tpu.vector_store %arg4[%c0_5, %c0_6], %8 {strides = array<i32>} : memref<64x128xf32, #tpu.memory_space<vmem>>, vector<64x128xf32>,
    return
  }
  func.func @transform_0(%arg0: i32) -> (i32, i32) {
    %c0_i32 = arith.constant 0 : i32
    %c0_i32_0 = arith.constant 0 : i32
    return %arg0, %c0_i32 : i32, i32
  }
  func.func @transform_1(%arg0: i32) -> (i32, i32) {
    %c0_i32 = arith.constant 0 : i32
    %c0_i32_0 = arith.constant 0 : i32
    %c0_i32_1 = arith.constant 0 : i32
    return %c0_i32, %c0_i32_0 : i32, i32
  }
  func.func @transform_2(%arg0: i32) -> (i32, i32) {
    %c0_i32 = arith.constant 0 : i32
    %c0_i32_0 = arith.constant 0 : i32
    %c0_i32_1 = arith.constant 0 : i32
    return %c0_i32, %c0_i32_0 : i32, i32
  }
  func.func @transform_3(%arg0: i32) -> (i32, i32) {
    %c0_i32 = arith.constant 0 : i32
    %c0_i32_0 = arith.constant 0 : i32
    return %arg0, %c0_i32 : i32, i32
  }
}

</mosaic_0001>

<llo_original>
// kernel: down_forward.7
$region0: #{down_forward.7}
  #allocation0 [shape = 'u32[]', space=smem, size = 0x4, offset = 0x4, fixed_abs, tag = 'smem constant byte address 0x4 - core index']
  #allocation1 [shape = 'u32[144,128]{1,0:T(1,128)}', space=vmem, size = 0x12000, scoped, tag = 'internal scratch']
  %s0 = inlined_call_operand.vmem [shape: f32[128,128], index: 0, kind: input, shape index: {}]
  %s1 = inlined_call_operand.vmem [shape: f32[1,128], index: 1, kind: input, shape index: {}]
  %s2 = inlined_call_operand.vmem [shape: f32[1,128], index: 2, kind: input, shape index: {}]
  %s3 = inlined_call_operand.vmem [shape: f32[128,128], index: 3, kind: output, shape index: {}]
  %s4 = sld [smem:[#allocation0]]
  $region45: #{down_forward.7} parent=0
    _
  %s6 = ssub.s32 1, %s4
  %s7 = scalar_select 0, %s6, %s4
  loop: start=0, step=1, limit=4
  $region2: #{down_forward.7} parent=0 // loop_pre_header
    _
  $region3: #{down_forward.7} parent=0 // loop_header
    %s9 = sphi 0, %s13
    %p10 = scmp.ge.s32.totalorder %s9, 4
    %s19 = sphi 0, %s21
    %s22 = sphi 0, %s19
    %s23 = sphi 0, %s22
    %s39 = sphi 0, %s23
    %s43 = sphi 0, %s43
    %s45 = sphi 0, %s43
    %s46 = sphi 0, %s45
    %s60 = sphi 0, %s46
    %s64 = sphi 0, %s64
    %s66 = sphi 0, %s64
    %s67 = sphi 0, %s66
    %s81 = sphi 0, %s67
    %s87 = sphi 0, %s89
    %s90 = sphi 0, %s87
    %s91 = sphi 0, %s90
    %s107 = sphi 0, %s91
  $region4: #{down_forward.7} parent=0 // loop_header_branch
    %12 = sbr.rel (%p10) target = $region8
  $region5: #{down_forward.7} parent=0 // loop_body
    %s14 = ssub.s32 %s9, 1
    %s15 = ssub.s32 %s9, 2
    %s16 = sadd.s32 %s9, 1
    %s17 = ssub.s32 %s9, %s16
    %p18 = scmp.eq.s32.totalorder %s17, 0
    %s20 = sadd.s32 %s19, 1
    %s21 = scalar_select %p18, %s19, %s20
    %p24 = pneg %p18
    %p25 = scmp.eq.s32.totalorder %s9, 1
    %p26 = por %p24, %p25
    %p27 = scmp.ne.s32.totalorder %s19, %s22
    %p28 = scmp.eq.s32.totalorder %s9, 0
    %p29 = por %p27, %p28
    %p30 = scmp.ne.s32.totalorder %s19, %s22
    %p31 = scmp.eq.s32.totalorder %s14, 1
    %p32 = por %p30, %p31
    %p33 = scmp.ne.s32.totalorder %s22, %s23
    %p34 = scmp.eq.s32.totalorder %s14, 0
    %p35 = por %p33, %p34
    %p36 = scmp.ne.s32.totalorder %s22, %s23
    %p37 = scmp.eq.s32.totalorder %s15, 1
    %p38 = por %p36, %p37
    %p40 = scmp.ne.s32.totalorder %s23, %s39
    %p41 = scmp.eq.s32.totalorder %s15, 0
    %p42 = por %p40, %p41
    %s44 = sadd.s32 %s43, 1
    %p47 = scmp.eq.s32.totalorder %s9, 1
    %p48 = scmp.ne.s32.totalorder %s43, %s45
    %p49 = scmp.eq.s32.totalorder %s9, 0
    %p50 = por %p48, %p49
    %p51 = scmp.ne.s32.totalorder %s43, %s45
    %p52 = scmp.eq.s32.totalorder %s14, 1
    %p53 = por %p51, %p52
    %p54 = scmp.ne.s32.totalorder %s45, %s46
    %p55 = scmp.eq.s32.totalorder %s14, 0
    %p56 = por %p54, %p55
    %p57 = scmp.ne.s32.totalorder %s45, %s46
    %p58 = scmp.eq.s32.totalorder %s15, 1
    %p59 = por %p57, %p58
    %p61 = scmp.ne.s32.totalorder %s46, %s60
    %p62 = scmp.eq.s32.totalorder %s15, 0
    %p63 = por %p61, %p62
    %s65 = sadd.s32 %s64, 1
    %p68 = scmp.eq.s32.totalorder %s9, 1
    %p69 = scmp.ne.s32.totalorder %s64, %s66
    %p70 = scmp.eq.s32.totalorder %s9, 0
    %p71 = por %p69, %p70
    %p72 = scmp.ne.s32.totalorder %s64, %s66
    %p73 = scmp.eq.s32.totalorder %s14, 1
    %p74 = por %p72, %p73
    %p75 = scmp.ne.s32.totalorder %s66, %s67
    %p76 = scmp.eq.s32.totalorder %s14, 0
    %p77 = por %p75, %p76
    %p78 = scmp.ne.s32.totalorder %s66, %s67
    %p79 = scmp.eq.s32.totalorder %s15, 1
    %p80 = por %p78, %p79
    %p82 = scmp.ne.s32.totalorder %s67, %s81
    %p83 = scmp.eq.s32.totalorder %s15, 0
    %p84 = por %p82, %p83
    %s85 = ssub.s32 %s9, %s16
    %p86 = scmp.eq.s32.totalorder %s85, 0
    %s88 = sadd.s32 %s87, 1
    %s89 = scalar_select %p86, %s87, %s88
    %p92 = pneg %p86
    %p93 = scmp.eq.s32.totalorder %s9, 1
    %p94 = por %p92, %p93
    %p95 = scmp.ne.s32.totalorder %s87, %s90
    %p96 = scmp.eq.s32.totalorder %s9, 0
    %p97 = por %p95, %p96
    %p98 = scmp.ne.s32.totalorder %s87, %s90
    %p99 = scmp.eq.s32.totalorder %s14, 1
    %p100 = por %p98, %p99
    %p101 = scmp.ne.s32.totalorder %s90, %s91
    %p102 = scmp.eq.s32.totalorder %s14, 0
    %p103 = por %p101, %p102
    %p104 = scmp.ne.s32.totalorder %s90, %s91
    %p105 = scmp.eq.s32.totalorder %s15, 1
    %p106 = por %p104, %p105
    %p108 = scmp.ne.s32.totalorder %s91, %s107
    %p109 = scmp.eq.s32.totalorder %s15, 0
    %p110 = por %p108, %p109
    %p111 = scmp.le.s32.totalorder 1, %s9
    %p112 = scmp.lt.s32.totalorder %s9, 3
    %p113 = pnand %p111, %p112
    %p114 = pneg %p113
    // Predicated region
    $region9: #{down_forward.7} parent=5 // pred_check
      _
    $region10: #{down_forward.7} parent=5 // pred_check_branch
      %116 = sbr.rel (%p113) target = $region12
    $region11: #{down_forward.7} parent=5 // pred_region
      %s117 = ssub.s32 %s9, 1
      // Predicated region
      $region13: #{down_forward.7} parent=11 // pred_check
        %p118 = pneg %p56
      $region14: #{down_forward.7} parent=11 // pred_check_branch
        %120 = sbr.rel (%p118) target = $region16
      $region15: #{down_forward.7} parent=11 // pred_region
        _
      $region16: #{down_forward.7} parent=11 // pred_fallthru
        _
      // Predicated region
      $region17: #{down_forward.7} parent=11 // pred_check
        %p121 = pneg %p77
      $region18: #{down_forward.7} parent=11 // pred_check_branch
        %123 = sbr.rel (%p121) target = $region20
      $region19: #{down_forward.7} parent=11 // pred_region
        _
      $region20: #{down_forward.7} parent=11 // pred_fallthru
        _
    $region12: #{down_forward.7} parent=5 // pred_fallthru
      _
    %p124 = scmp.lt.s32.totalorder %s9, 2
    // Predicated region
    $region21: #{down_forward.7} parent=5 // pred_check
      %p125 = pneg %p124
    $region22: #{down_forward.7} parent=5 // pred_check_branch
      %127 = sbr.rel (%p125) target = $region24
    $region23: #{down_forward.7} parent=5 // pred_region
      // Predicated region
      $region25: #{down_forward.7} parent=23 // pred_check
        %p128 = pneg %p29
      $region26: #{down_forward.7} parent=23 // pred_check_branch
        %130 = sbr.rel (%p128) target = $region28
      $region27: #{down_forward.7} parent=23 // pred_region
        %s131 = smul.u32 8, %s9
        %p132 = scmp.lt.s32.totalorder %s131, 15
        %s133 = scalar_select %p132, %s131, 15
        %s134 = smul.addr %s133, 8
        %s135 = scalar_lea.vmem %s0, %s134
        %s136 = smul.u32 8, %s9
      $region28: #{down_forward.7} parent=23 // pred_fallthru
        _
    $region24: #{down_forward.7} parent=5 // pred_fallthru
      _
    %p137 = scmp.le.s32.totalorder 1, %s9
    %p138 = scmp.lt.s32.totalorder %s9, 3
    %p139 = pnand %p137, %p138
    %p140 = pneg %p139
    // Predicated region
    $region29: #{down_forward.7} parent=5 // pred_check
      _
    $region30: #{down_forward.7} parent=5 // pred_check_branch
      %142 = sbr.rel (%p139) target = $region32
    $region31: #{down_forward.7} parent=5 // pred_region
      %s143 = ssub.s32 %s9, 1
      %s144 = smul.u32 8, %s14
      %p145 = scmp.lt.s32.totalorder %s144, 15
      %s146 = scalar_select %p145, %s144, 15
      %s147 = smul.addr %s146, 8
      %s148 = scalar_lea.vmem %s0, %s147
      %p149 = pneg %p35
      %p150 = pneg %p32
      %p151 = pneg %p56
      %p152 = pneg %p53
      %p153 = pneg %p77
      %p154 = pneg %p74
      %p155 = pneg %p103
      %p156 = pneg %p100
      %s157 = smul.u32 8, %s14
      %p158 = scmp.lt.s32.totalorder %s157, 15
      %s159 = scalar_select %p158, %s157, 15
      %s160 = smul.addr %s159, 8
      %s161 = scalar_lea.vmem %s3, %s160
      %s162 = smul.u32 8, %s14
      %p163 = scmp.lt.s32.totalorder %s162, 15
      %s164 = scalar_select %p163, %s162, 15
      %s165 = smul.addr %s164, 8
      %s166 = scalar_lea.vmem %s0, %s165
      %s167 = smul.u32 8, %s14
      %s168 = smul.u32 8, %s14
      %p169 = scmp.lt.s32.totalorder %s168, 15
      %s170 = scalar_select %p169, %s168, 15
      %s171 = smul.addr %s170, 8
      %s172 = scalar_lea.vmem %s3, %s171
      %s173 = smul.u32 8, %s14
      %v174 = vld [vmem:[%s166] sm:$0xff]
      %v175 = vld [vmem:[%s166 + $0x8] sm:$0xff]
      %v176 = vld [vmem:[%s166 + $0x10] sm:$0xff]
      %v177 = vld [vmem:[%s166 + $0x18] sm:$0xff]
      %v178 = vld [vmem:[%s166 + $0x20] sm:$0xff]
      %v179 = vld [vmem:[%s166 + $0x28] sm:$0xff]
      %v180 = vld [vmem:[%s166 + $0x30] sm:$0xff]
      %v181 = vld [vmem:[%s166 + $0x38] sm:$0xff]
      %v182 = vld [vmem:[%s1] sm:$0x1]
      %v184 = vlaneseq
      %v185 = vshrl.u32 %v184, 7
      %v186 = vsub.s32 0, %v185
      %v187 = vrot.slane %v182, %v186
      %v189 = vmul.f32 %v174, %v187
      %v190 = vmul.f32 %v175, %v187
      %v191 = vmul.f32 %v176, %v187
      %v192 = vmul.f32 %v177, %v187
      %v193 = vmul.f32 %v178, %v187
      %v194 = vmul.f32 %v179, %v187
      %v195 = vmul.f32 %v180, %v187
      %v196 = vmul.f32 %v181, %v187
      %v197 = vld [vmem:[%s2] sm:$0x1]
      %v199 = vlaneseq
      %v200 = vshrl.u32 %v199, 7
      %v201 = vsub.s32 0, %v200
      %v202 = vrot.slane %v197, %v201
      %v204 = vadd.f32 %v189, %v202
      %v205 = vadd.f32 %v190, %v202
      %v206 = vadd.f32 %v191, %v202
      %v207 = vadd.f32 %v192, %v202
      %v208 = vadd.f32 %v193, %v202
      %v209 = vadd.f32 %v194, %v202
      %v210 = vadd.f32 %v195, %v202
      %v211 = vadd.f32 %v196, %v202
      %v212 = vmax.f32 %v204, 0.0
      %v213 = vmax.f32 %v205, 0.0
      %v214 = vmax.f32 %v206, 0.0
      %v215 = vmax.f32 %v207, 0.0
      %v216 = vmax.f32 %v208, 0.0
      %v217 = vmax.f32 %v209, 0.0
      %v218 = vmax.f32 %v210, 0.0
      %v219 = vmax.f32 %v211, 0.0
      %220 = vst [vmem:[%s172] sm:$0xff] %v212
      %221 = vst [vmem:[%s172 + $0x8] sm:$0xff] %v213
      %222 = vst [vmem:[%s172 + $0x10] sm:$0xff] %v214
      %223 = vst [vmem:[%s172 + $0x18] sm:$0xff] %v215
      %224 = vst [vmem:[%s172 + $0x20] sm:$0xff] %v216
      %225 = vst [vmem:[%s172 + $0x28] sm:$0xff] %v217
      %226 = vst [vmem:[%s172 + $0x30] sm:$0xff] %v218
      %227 = vst [vmem:[%s172 + $0x38] sm:$0xff] %v219
      %s228 = smul.u32 8, %s14
      %p229 = scmp.lt.s32.totalorder %s228, 15
      %s230 = scalar_select %p229, %s228, 15
      %s231 = smul.addr %s230, 8
      %s232 = scalar_lea.vmem %s3, %s231
      // Predicated region
      $region33: #{down_forward.7} parent=31 // pred_check
        %p233 = pneg %p100
      $region34: #{down_forward.7} parent=31 // pred_check_branch
        %235 = sbr.rel (%p233) target = $region36
      $region35: #{down_forward.7} parent=31 // pred_region
        %s236 = smul.u32 8, %s14
      $region36: #{down_forward.7} parent=31 // pred_fallthru
        _
    $region32: #{down_forward.7} parent=5 // pred_fallthru
      _
    %p237 = scmp.le.s32.totalorder 2, %s9
    // Predicated region
    $region37: #{down_forward.7} parent=5 // pred_check
      %p238 = pneg %p237
    $region38: #{down_forward.7} parent=5 // pred_check_branch
      %240 = sbr.rel (%p238) target = $region40
    $region39: #{down_forward.7} parent=5 // pred_region
      %s241 = ssub.s32 %s9, 2
      // Predicated region
      $region41: #{down_forward.7} parent=39 // pred_check
        %p242 = pneg %p106
      $region42: #{down_forward.7} parent=39 // pred_check_branch
        %244 = sbr.rel (%p242) target = $region44
      $region43: #{down_forward.7} parent=39 // pred_region
        %s245 = smul.u32 8, %s15
        %p246 = scmp.lt.s32.totalorder %s245, 15
        %s247 = scalar_select %p246, %s245, 15
        %s248 = smul.addr %s247, 8
        %s249 = scalar_lea.vmem %s3, %s248
      $region44: #{down_forward.7} parent=39 // pred_fallthru
        _
    $region40: #{down_forward.7} parent=5 // pred_fallthru
      _
  $region6: #{down_forward.7} parent=0 // loop_footer
    %s13 = sadd.s32 1, %s9
  $region7: #{down_forward.7} parent=0 // loop_footer_branch
    %8 = sbr.rel target = $region3
  $region8: #{down_forward.7} parent=0 // loop_exit
    _

// kernel: down_forward.5
$region0: #{down_forward.5}
  #allocation0 [shape = 'u32[]', space=smem, size = 0x4, offset = 0x4, fixed_abs, tag = 'smem constant byte address 0x4 - core index']
  #allocation1 [shape = 'u32[144,128]{1,0:T(1,128)}', space=vmem, size = 0x12000, scoped, tag = 'internal scratch']
  %s0 = inlined_call_operand.vmem [shape: f32[2,8,2,8,2,4], index: 0, kind: input, shape index: {}]
  %s1 = inlined_call_operand.vmem [shape: f32[2,8,8,128], index: 1, kind: output, shape index: {}]
  %s2 = sld [smem:[#allocation0]]
  $region86: #{down_forward.5} parent=0
    _
  %s4 = ssub.s32 1, %s2
  %s5 = scalar_select 0, %s4, %s2
  $region1: #{down_forward.5} parent=0
    #allocation2 [shape = 'u8[131072]{0}', space=vmem, size = 0x20000, scoped, tag = 'input window, operand 0']
    loop: start=0, step=1, limit=6
    $region2: #{down_forward.5} parent=1 // loop_pre_header
      _
    $region3: #{down_forward.5} parent=1 // loop_header
      %s7 = sphi 0, %s11
      %p8 = scmp.ge.s32.totalorder %s7, 6
      %s14 = sphi 0, %s26
      %s15 = sphi 0, %s22
      %s16 = sphi 0, %s14
      %s17 = sphi 0, %s15
      %s18 = sphi 0, %s16
      %s19 = sphi 0, %s17
      %s31 = sphi 0, %s33
      %s34 = sphi 0, %s31
      %s35 = sphi 0, %s34
      %s51 = sphi 0, %s35
      %s57 = sphi 0, %s59
      %s60 = sphi 0, %s57
      %s61 = sphi 0, %s60
      %s77 = sphi 0, %s61
    $region4: #{down_forward.5} parent=1 // loop_header_branch
      %10 = sbr.rel (%p8) target = $region8
    $region5: #{down_forward.5} parent=1 // loop_body
      %s12 = ssub.s32 %s7, 1
      %s13 = ssub.s32 %s7, 2
      %s20 = sadd.s32 1, %s15
      %p21 = scmp.ge.s32.totalorder %s20, 2
      %s22 = scalar_select %p21, 0, %s20
      %s23 = sadd.s32 1, %s14
      %s24 = scalar_select %p21, %s23, %s14
      %p25 = scmp.ge.s32.totalorder %s24, 2
      %s26 = scalar_select %p25, 0, %s24
      %s27 = ssub.s32 %s14, %s26
      %s28 = ssub.s32 %s15, %s22
      %s29 = sor.u32 %s27, %s28
      %p30 = scmp.eq.s32.totalorder %s29, 0
      %s32 = sadd.s32 %s31, 1
      %s33 = scalar_select %p30, %s31, %s32
      %p36 = pneg %p30
      %p37 = scmp.eq.s32.totalorder %s7, 3
      %p38 = por %p36, %p37
      %p39 = scmp.ne.s32.totalorder %s31, %s34
      %p40 = scmp.eq.s32.totalorder %s7, 0
      %p41 = por %p39, %p40
      %p42 = scmp.ne.s32.totalorder %s31, %s34
      %p43 = scmp.eq.s32.totalorder %s12, 3
      %p44 = por %p42, %p43
      %p45 = scmp.ne.s32.totalorder %s34, %s35
      %p46 = scmp.eq.s32.totalorder %s12, 0
      %p47 = por %p45, %p46
      %p48 = scmp.ne.s32.totalorder %s34, %s35
      %p49 = scmp.eq.s32.totalorder %s13, 3
      %p50 = por %p48, %p49
      %p52 = scmp.ne.s32.totalorder %s35, %s51
      %p53 = scmp.eq.s32.totalorder %s13, 0
      %p54 = por %p52, %p53
      %s55 = ssub.s32 %s14, %s26
      %p56 = scmp.eq.s32.totalorder %s55, 0
      %s58 = sadd.s32 %s57, 1
      %s59 = scalar_select %p56, %s57, %s58
      %p62 = pneg %p56
      %p63 = scmp.eq.s32.totalorder %s7, 3
      %p64 = por %p62, %p63
      %p65 = scmp.ne.s32.totalorder %s57, %s60
      %p66 = scmp.eq.s32.totalorder %s7, 0
      %p67 = por %p65, %p66
      %p68 = scmp.ne.s32.totalorder %s57, %s60
      %p69 = scmp.eq.s32.totalorder %s12, 3
      %p70 = por %p68, %p69
      %p71 = scmp.ne.s32.totalorder %s60, %s61
      %p72 = scmp.eq.s32.totalorder %s12, 0
      %p73 = por %p71, %p72
      %p74 = scmp.ne.s32.totalorder %s60, %s61
      %p75 = scmp.eq.s32.totalorder %s13, 3
      %p76 = por %p74, %p75
      %p78 = scmp.ne.s32.totalorder %s61, %s77
      %p79 = scmp.eq.s32.totalorder %s13, 0
      %p80 = por %p78, %p79
      %p81 = scmp.le.s32.totalorder 1, %s7
      %p82 = scmp.lt.s32.totalorder %s7, 5
      %p83 = pnand %p81, %p82
      %p84 = pneg %p83
      // Predicated region
      $region9: #{down_forward.5} parent=5 // pred_check
        _
      $region10: #{down_forward.5} parent=5 // pred_check_branch
        %86 = sbr.rel (%p83) target = $region12
      $region11: #{down_forward.5} parent=5 // pred_region
        %s87 = ssub.s32 %s7, 1
      $region12: #{down_forward.5} parent=5 // pred_fallthru
        _
      %p88 = scmp.lt.s32.totalorder %s7, 4
      // Predicated region
      $region13: #{down_forward.5} parent=5 // pred_check
        %p89 = pneg %p88
      $region14: #{down_forward.5} parent=5 // pred_check_branch
        %91 = sbr.rel (%p89) target = $region16
      $region15: #{down_forward.5} parent=5 // pred_region
        // Predicated region
        $region17: #{down_forward.5} parent=15 // pred_check
          %p92 = pneg %p41
        $region18: #{down_forward.5} parent=15 // pred_check_branch
          %94 = sbr.rel (%p92) target = $region20
        $region19: #{down_forward.5} parent=15 // pred_region
          %s95 = sand.u32 %s31, 1
          %s96 = sand.u32 %s31, 1
          %s97 = smul.addr %s96, 128
          %s98 = scalar_lea.vmem [#allocation2], %s97
          %s99 = smul.addr %s15, 8
          %s100 = smul.addr %s14, 128
          %s101 = sadd.s32 %s99, %s100
          %s102 = smul.addr %s101, 2
          %s103 = scalar_lea.vmem %s0, %s102
          // Predicated region
          $region21: #{down_forward.5} parent=19 // pred_check
            _
          $region22: #{down_forward.5} parent=19 // pred_check_branch
            %105 = sbr.rel (0) target = $region24
          $region23: #{down_forward.5} parent=19 // pred_region
            // Predicated region
            $region25: #{down_forward.5} parent=23 // pred_check
              _
            $region26: #{down_forward.5} parent=23 // pred_check_branch
              %107 = sbr.rel target = $region28
            $region27: #{down_forward.5} parent=23 // pred_region
              // Predicated region
              $region40: #{down_forward.5} parent=27 // pred_check
                _
              $region41: #{down_forward.5} parent=27 // pred_check_branch
                %248 = sbr.rel (0) target = $region43
              $region42: #{down_forward.5} parent=27 // pred_region
                loop: start=0, step=1, limit=1
                $region44: #{down_forward.5} parent=42 // loop_pre_header
                  _
                $region45: #{down_forward.5} parent=42 // loop_header
                  %s250 = sphi 0, %s254
                  %p251 = scmp.ge.s32.totalorder %s250, 1
                  %s255 = sphi %s103, %s103
                  %s256 = sphi %s98, %s98
                $region46: #{down_forward.5} parent=42 // loop_header_branch
                  %253 = sbr.rel (%p251) target = $region50
                $region47: #{down_forward.5} parent=42 // loop_body
                  _
                $region48: #{down_forward.5} parent=42 // loop_footer
                  %s254 = sadd.s32 1, %s250
                $region49: #{down_forward.5} parent=42 // loop_footer_branch
                  %249 = sbr.rel target = $region45
                $region50: #{down_forward.5} parent=42 // loop_exit
                  _
                loop: start=0, step=1, limit=1
                $region51: #{down_forward.5} parent=42 // loop_pre_header
                  _
                $region52: #{down_forward.5} parent=42 // loop_header
                  %s259 = sphi 0, %s263
                  %p260 = scmp.ge.s32.totalorder %s259, 1
                  %s264 = sphi %s103, %s103
                  %s265 = sphi %s98, %s98
                $region53: #{down_forward.5} parent=42 // loop_header_branch
                  %262 = sbr.rel (%p260) target = $region57
                $region54: #{down_forward.5} parent=42 // loop_body
                  %v266 = vld [vmem:[%s264] sm:$0x3]
                  %267 = vst [vmem:[%s265] sm:$0x3] %v266
                  %v268 = vld [vmem:[%s264 + $0x2] sm:$0x3]
                  %269 = vst [vmem:[%s265 + $0x2] sm:$0x3] %v268
                  %v270 = vld [vmem:[%s264 + $0x4] sm:$0x3]
                  %271 = vst [vmem:[%s265 + $0x4] sm:$0x3] %v270
                  %v272 = vld [vmem:[%s264 + $0x6] sm:$0x3]
                  %273 = vst [vmem:[%s265 + $0x6] sm:$0x3] %v272
                  %v274 = vld [vmem:[%s264 + $0x8] sm:$0x3]
                  %275 = vst [vmem:[%s265 + $0x8] sm:$0x3] %v274
                  %v276 = vld [vmem:[%s264 + $0xa] sm:$0x3]
                  %277 = vst [vmem:[%s265 + $0xa] sm:$0x3] %v276
                  %v278 = vld [vmem:[%s264 + $0xc] sm:$0x3]
                  %279 = vst [vmem:[%s265 + $0xc] sm:$0x3] %v278
                  %v280 = vld [vmem:[%s264 + $0xe] sm:$0x3]
                  %281 = vst [vmem:[%s265 + $0xe] sm:$0x3] %v280
                  %v282 = vld [vmem:[%s264 + $0x20] sm:$0x3]
                  %283 = vst [vmem:[%s265 + $0x10] sm:$0x3] %v282
                  %v284 = vld [vmem:[%s264 + $0x22] sm:$0x3]
                  %285 = vst [vmem:[%s265 + $0x12] sm:$0x3] %v284
                  %v286 = vld [vmem:[%s264 + $0x24] sm:$0x3]
                  %287 = vst [vmem:[%s265 + $0x14] sm:$0x3] %v286
                  %v288 = vld [vmem:[%s264 + $0x26] sm:$0x3]
                  %289 = vst [vmem:[%s265 + $0x16] sm:$0x3] %v288
                  %v290 = vld [vmem:[%s264 + $0x28] sm:$0x3]
                  %291 = vst [vmem:[%s265 + $0x18] sm:$0x3] %v290
                  %v292 = vld [vmem:[%s264 + $0x2a] sm:$0x3]
                  %293 = vst [vmem:[%s265 + $0x1a] sm:$0x3] %v292
                  %v294 = vld [vmem:[%s264 + $0x2c] sm:$0x3]
                  %295 = vst [vmem:[%s265 + $0x1c] sm:$0x3] %v294
                  %v296 = vld [vmem:[%s264 + $0x2e] sm:$0x3]
                  %297 = vst [vmem:[%s265 + $0x1e] sm:$0x3] %v296
                  %v298 = vld [vmem:[%s264 + $0x40] sm:$0x3]
                  %299 = vst [vmem:[%s265 + $0x20] sm:$0x3] %v298
                  %v300 = vld [vmem:[%s264 + $0x42] sm:$0x3]
                  %301 = vst [vmem:[%s265 + $0x22] sm:$0x3] %v300
                  %v302 = vld [vmem:[%s264 + $0x44] sm:$0x3]
                  %303 = vst [vmem:[%s265 + $0x24] sm:$0x3] %v302
                  %v304 = vld [vmem:[%s264 + $0x46] sm:$0x3]
                  %305 = vst [vmem:[%s265 + $0x26] sm:$0x3] %v304
                  %v306 = vld [vmem:[%s264 + $0x48] sm:$0x3]
                  %307 = vst [vmem:[%s265 + $0x28] sm:$0x3] %v306
                  %v308 = vld [vmem:[%s264 + $0x4a] sm:$0x3]
                  %309 = vst [vmem:[%s265 + $0x2a] sm:$0x3] %v308
                  %v310 = vld [vmem:[%s264 + $0x4c] sm:$0x3]
                  %311 = vst [vmem:[%s265 + $0x2c] sm:$0x3] %v310
                  %v312 = vld [vmem:[%s264 + $0x4e] sm:$0x3]
                  %313 = vst [vmem:[%s265 + $0x2e] sm:$0x3] %v312
                  %v314 = vld [vmem:[%s264 + $0x60] sm:$0x3]
                  %315 = vst [vmem:[%s265 + $0x30] sm:$0x3] %v314
                  %v316 = vld [vmem:[%s264 + $0x62] sm:$0x3]
                  %317 = vst [vmem:[%s265 + $0x32] sm:$0x3] %v316
                  %v318 = vld [vmem:[%s264 + $0x64] sm:$0x3]
                  %319 = vst [vmem:[%s265 + $0x34] sm:$0x3] %v318
                  %v320 = vld [vmem:[%s264 + $0x66] sm:$0x3]
                  %321 = vst [vmem:[%s265 + $0x36] sm:$0x3] %v320
                  %v322 = vld [vmem:[%s264 + $0x68] sm:$0x3]
                  %323 = vst [vmem:[%s265 + $0x38] sm:$0x3] %v322
                  %v324 = vld [vmem:[%s264 + $0x6a] sm:$0x3]
                  %325 = vst [vmem:[%s265 + $0x3a] sm:$0x3] %v324
                  %v326 = vld [vmem:[%s264 + $0x6c] sm:$0x3]
                  %327 = vst [vmem:[%s265 + $0x3c] sm:$0x3] %v326
                  %v328 = vld [vmem:[%s264 + $0x6e] sm:$0x3]
                  %329 = vst [vmem:[%s265 + $0x3e] sm:$0x3] %v328
                  %v330 = vld [vmem:[%s264 + $0x80] sm:$0x3]
                  %331 = vst [vmem:[%s265 + $0x40] sm:$0x3] %v330
                  %v332 = vld [vmem:[%s264 + $0x82] sm:$0x3]
                  %333 = vst [vmem:[%s265 + $0x42] sm:$0x3] %v332
                  %v334 = vld [vmem:[%s264 + $0x84] sm:$0x3]
                  %335 = vst [vmem:[%s265 + $0x44] sm:$0x3] %v334
                  %v336 = vld [vmem:[%s264 + $0x86] sm:$0x3]
                  %337 = vst [vmem:[%s265 + $0x46] sm:$0x3] %v336
                  %v338 = vld [vmem:[%s264 + $0x88] sm:$0x3]
                  %339 = vst [vmem:[%s265 + $0x48] sm:$0x3] %v338
                  %v340 = vld [vmem:[%s264 + $0x8a] sm:$0x3]
                  %341 = vst [vmem:[%s265 + $0x4a] sm:$0x3] %v340
                  %v342 = vld [vmem:[%s264 + $0x8c] sm:$0x3]
                  %343 = vst [vmem:[%s265 + $0x4c] sm:$0x3] %v342
                  %v344 = vld [vmem:[%s264 + $0x8e] sm:$0x3]
                  %345 = vst [vmem:[%s265 + $0x4e] sm:$0x3] %v344
                  %v346 = vld [vmem:[%s264 + $0xa0] sm:$0x3]
                  %347 = vst [vmem:[%s265 + $0x50] sm:$0x3] %v346
                  %v348 = vld [vmem:[%s264 + $0xa2] sm:$0x3]
                  %349 = vst [vmem:[%s265 + $0x52] sm:$0x3] %v348
                  %v350 = vld [vmem:[%s264 + $0xa4] sm:$0x3]
                  %351 = vst [vmem:[%s265 + $0x54] sm:$0x3] %v350
                  %v352 = vld [vmem:[%s264 + $0xa6] sm:$0x3]
                  %353 = vst [vmem:[%s265 + $0x56] sm:$0x3] %v352
                  %v354 = vld [vmem:[%s264 + $0xa8] sm:$0x3]
                  %355 = vst [vmem:[%s265 + $0x58] sm:$0x3] %v354
                  %v356 = vld [vmem:[%s264 + $0xaa] sm:$0x3]
                  %357 = vst [vmem:[%s265 + $0x5a] sm:$0x3] %v356
                  %v358 = vld [vmem:[%s264 + $0xac] sm:$0x3]
                  %359 = vst [vmem:[%s265 + $0x5c] sm:$0x3] %v358
                  %v360 = vld [vmem:[%s264 + $0xae] sm:$0x3]
                  %361 = vst [vmem:[%s265 + $0x5e] sm:$0x3] %v360
                  %v362 = vld [vmem:[%s264 + $0xc0] sm:$0x3]
                  %363 = vst [vmem:[%s265 + $0x60] sm:$0x3] %v362
                  %v364 = vld [vmem:[%s264 + $0xc2] sm:$0x3]
                  %365 = vst [vmem:[%s265 + $0x62] sm:$0x3] %v364
                  %v366 = vld [vmem:[%s264 + $0xc4] sm:$0x3]
                  %367 = vst [vmem:[%s265 + $0x64] sm:$0x3] %v366
                  %v368 = vld [vmem:[%s264 + $0xc6] sm:$0x3]
                  %369 = vst [vmem:[%s265 + $0x66] sm:$0x3] %v368
                  %v370 = vld [vmem:[%s264 + $0xc8] sm:$0x3]
                  %371 = vst [vmem:[%s265 + $0x68] sm:$0x3] %v370
                  %v372 = vld [vmem:[%s264 + $0xca] sm:$0x3]
                  %373 = vst [vmem:[%s265 + $0x6a] sm:$0x3] %v372
                  %v374 = vld [vmem:[%s264 + $0xcc] sm:$0x3]
                  %375 = vst [vmem:[%s265 + $0x6c] sm:$0x3] %v374
                  %v376 = vld [vmem:[%s264 + $0xce] sm:$0x3]
                  %377 = vst [vmem:[%s265 + $0x6e] sm:$0x3] %v376
                  %v378 = vld [vmem:[%s264 + $0xe0] sm:$0x3]
                  %379 = vst [vmem:[%s265 + $0x70] sm:$0x3] %v378
                  %v380 = vld [vmem:[%s264 + $0xe2] sm:$0x3]
                  %381 = vst [vmem:[%s265 + $0x72] sm:$0x3] %v380
                  %v382 = vld [vmem:[%s264 + $0xe4] sm:$0x3]
                  %383 = vst [vmem:[%s265 + $0x74] sm:$0x3] %v382
                  %v384 = vld [vmem:[%s264 + $0xe6] sm:$0x3]
                  %385 = vst [vmem:[%s265 + $0x76] sm:$0x3] %v384
                  %v386 = vld [vmem:[%s264 + $0xe8] sm:$0x3]
                  %387 = vst [vmem:[%s265 + $0x78] sm:$0x3] %v386
                  %v388 = vld [vmem:[%s264 + $0xea] sm:$0x3]
                  %389 = vst [vmem:[%s265 + $0x7a] sm:$0x3] %v388
                  %v390 = vld [vmem:[%s264 + $0xec] sm:$0x3]
                  %391 = vst [vmem:[%s265 + $0x7c] sm:$0x3] %v390
                  %v392 = vld [vmem:[%s264 + $0xee] sm:$0x3]
                  %393 = vst [vmem:[%s265 + $0x7e] sm:$0x3] %v392
                $region55: #{down_forward.5} parent=42 // loop_footer
                  %s263 = sadd.s32 1, %s259
                $region56: #{down_forward.5} parent=42 // loop_footer_branch
                  %258 = sbr.rel target = $region52
                $region57: #{down_forward.5} parent=42 // loop_exit
                  _
              $region43: #{down_forward.5} parent=27 // pred_fallthru
                _
            $region28: #{down_forward.5} parent=23 // pred_fallthru
              _
            // Predicated region
            $region29: #{down_forward.5} parent=23 // pred_check
              _
            $region30: #{down_forward.5} parent=23 // pred_check_branch
              %109 = sbr.rel (0) target = $region32
            $region31: #{down_forward.5} parent=23 // pred_region
              loop: start=0, step=1, limit=1
              $region33: #{down_forward.5} parent=31 // loop_pre_header
                _
              $region34: #{down_forward.5} parent=31 // loop_header
                %s112 = sphi 0, %s116
                %p113 = scmp.ge.s32.totalorder %s112, 1
                %s117 = sphi %s103, %s103
                %s118 = sphi %s98, %s98
              $region35: #{down_forward.5} parent=31 // loop_header_branch
                %115 = sbr.rel (%p113) target = $region39
              $region36: #{down_forward.5} parent=31 // loop_body
                %v119 = vld [vmem:[%s117] sm:$0x3]
                %120 = vst [vmem:[%s118] sm:$0x3] %v119
                %v121 = vld [vmem:[%s117 + $0x2] sm:$0x3]
                %122 = vst [vmem:[%s118 + $0x2] sm:$0x3] %v121
                %v123 = vld [vmem:[%s117 + $0x4] sm:$0x3]
                %124 = vst [vmem:[%s118 + $0x4] sm:$0x3] %v123
                %v125 = vld [vmem:[%s117 + $0x6] sm:$0x3]
                %126 = vst [vmem:[%s118 + $0x6] sm:$0x3] %v125
                %v127 = vld [vmem:[%s117 + $0x8] sm:$0x3]
                %128 = vst [vmem:[%s118 + $0x8] sm:$0x3] %v127
                %v129 = vld [vmem:[%s117 + $0xa] sm:$0x3]
                %130 = vst [vmem:[%s118 + $0xa] sm:$0x3] %v129
                %v131 = vld [vmem:[%s117 + $0xc] sm:$0x3]
                %132 = vst [vmem:[%s118 + $0xc] sm:$0x3] %v131
                %v133 = vld [vmem:[%s117 + $0xe] sm:$0x3]
                %134 = vst [vmem:[%s118 + $0xe] sm:$0x3] %v133
                %v135 = vld [vmem:[%s117 + $0x20] sm:$0x3]
                %136 = vst [vmem:[%s118 + $0x10] sm:$0x3] %v135
                %v137 = vld [vmem:[%s117 + $0x22] sm:$0x3]
                %138 = vst [vmem:[%s118 + $0x12] sm:$0x3] %v137
                %v139 = vld [vmem:[%s117 + $0x24] sm:$0x3]
                %140 = vst [vmem:[%s118 + $0x14] sm:$0x3] %v139
                %v141 = vld [vmem:[%s117 + $0x26] sm:$0x3]
                %142 = vst [vmem:[%s118 + $0x16] sm:$0x3] %v141
                %v143 = vld [vmem:[%s117 + $0x28] sm:$0x3]
                %144 = vst [vmem:[%s118 + $0x18] sm:$0x3] %v143
                %v145 = vld [vmem:[%s117 + $0x2a] sm:$0x3]
                %146 = vst [vmem:[%s118 + $0x1a] sm:$0x3] %v145
                %v147 = vld [vmem:[%s117 + $0x2c] sm:$0x3]
                %148 = vst [vmem:[%s118 + $0x1c] sm:$0x3] %v147
                %v149 = vld [vmem:[%s117 + $0x2e] sm:$0x3]
                %150 = vst [vmem:[%s118 + $0x1e] sm:$0x3] %v149
                %v151 = vld [vmem:[%s117 + $0x40] sm:$0x3]
                %152 = vst [vmem:[%s118 + $0x20] sm:$0x3] %v151
                %v153 = vld [vmem:[%s117 + $0x42] sm:$0x3]
                %154 = vst [vmem:[%s118 + $0x22] sm:$0x3] %v153
                %v155 = vld [vmem:[%s117 + $0x44] sm:$0x3]
                %156 = vst [vmem:[%s118 + $0x24] sm:$0x3] %v155
                %v157 = vld [vmem:[%s117 + $0x46] sm:$0x3]
                %158 = vst [vmem:[%s118 + $0x26] sm:$0x3] %v157
                %v159 = vld [vmem:[%s117 + $0x48] sm:$0x3]
                %160 = vst [vmem:[%s118 + $0x28] sm:$0x3] %v159
                %v161 = vld [vmem:[%s117 + $0x4a] sm:$0x3]
                %162 = vst [vmem:[%s118 + $0x2a] sm:$0x3] %v161
                %v163 = vld [vmem:[%s117 + $0x4c] sm:$0x3]
                %164 = vst [vmem:[%s118 + $0x2c] sm:$0x3] %v163
                %v165 = vld [vmem:[%s117 + $0x4e] sm:$0x3]
                %166 = vst [vmem:[%s118 + $0x2e] sm:$0x3] %v165
                %v167 = vld [vmem:[%s117 + $0x60] sm:$0x3]
                %168 = vst [vmem:[%s118 + $0x30] sm:$0x3] %v167
                %v169 = vld [vmem:[%s117 + $0x62] sm:$0x3]
                %170 = vst [vmem:[%s118 + $0x32] sm:$0x3] %v169
                %v171 = vld [vmem:[%s117 + $0x64] sm:$0x3]
                %172 = vst [vmem:[%s118 + $0x34] sm:$0x3] %v171
                %v173 = vld [vmem:[%s117 + $0x66] sm:$0x3]
                %174 = vst [vmem:[%s118 + $0x36] sm:$0x3] %v173
                %v175 = vld [vmem:[%s117 + $0x68] sm:$0x3]
                %176 = vst [vmem:[%s118 + $0x38] sm:$0x3] %v175
                %v177 = vld [vmem:[%s117 + $0x6a] sm:$0x3]
                %178 = vst [vmem:[%s118 + $0x3a] sm:$0x3] %v177
                %v179 = vld [vmem:[%s117 + $0x6c] sm:$0x3]
                %180 = vst [vmem:[%s118 + $0x3c] sm:$0x3] %v179
                %v181 = vld [vmem:[%s117 + $0x6e] sm:$0x3]
                %182 = vst [vmem:[%s118 + $0x3e] sm:$0x3] %v181
                %v183 = vld [vmem:[%s117 + $0x80] sm:$0x3]
                %184 = vst [vmem:[%s118 + $0x40] sm:$0x3] %v183
                %v185 = vld [vmem:[%s117 + $0x82] sm:$0x3]
                %186 = vst [vmem:[%s118 + $0x42] sm:$0x3] %v185
                %v187 = vld [vmem:[%s117 + $0x84] sm:$0x3]
                %188 = vst [vmem:[%s118 + $0x44] sm:$0x3] %v187
                %v189 = vld [vmem:[%s117 + $0x86] sm:$0x3]
                %190 = vst [vmem:[%s118 + $0x46] sm:$0x3] %v189
                %v191 = vld [vmem:[%s117 + $0x88] sm:$0x3]
                %192 = vst [vmem:[%s118 + $0x48] sm:$0x3] %v191
                %v193 = vld [vmem:[%s117 + $0x8a] sm:$0x3]
                %194 = vst [vmem:[%s118 + $0x4a] sm:$0x3] %v193
                %v195 = vld [vmem:[%s117 + $0x8c] sm:$0x3]
                %196 = vst [vmem:[%s118 + $0x4c] sm:$0x3] %v195
                %v197 = vld [vmem:[%s117 + $0x8e] sm:$0x3]
                %198 = vst [vmem:[%s118 + $0x4e] sm:$0x3] %v197
                %v199 = vld [vmem:[%s117 + $0xa0] sm:$0x3]
                %200 = vst [vmem:[%s118 + $0x50] sm:$0x3] %v199
                %v201 = vld [vmem:[%s117 + $0xa2] sm:$0x3]
                %202 = vst [vmem:[%s118 + $0x52] sm:$0x3] %v201
                %v203 = vld [vmem:[%s117 + $0xa4] sm:$0x3]
                %204 = vst [vmem:[%s118 + $0x54] sm:$0x3] %v203
                %v205 = vld [vmem:[%s117 + $0xa6] sm:$0x3]
                %206 = vst [vmem:[%s118 + $0x56] sm:$0x3] %v205
                %v207 = vld [vmem:[%s117 + $0xa8] sm:$0x3]
                %208 = vst [vmem:[%s118 + $0x58] sm:$0x3] %v207
                %v209 = vld [vmem:[%s117 + $0xaa] sm:$0x3]
                %210 = vst [vmem:[%s118 + $0x5a] sm:$0x3] %v209
                %v211 = vld [vmem:[%s117 + $0xac] sm:$0x3]
                %212 = vst [vmem:[%s118 + $0x5c] sm:$0x3] %v211
                %v213 = vld [vmem:[%s117 + $0xae] sm:$0x3]
                %214 = vst [vmem:[%s118 + $0x5e] sm:$0x3] %v213
                %v215 = vld [vmem:[%s117 + $0xc0] sm:$0x3]
                %216 = vst [vmem:[%s118 + $0x60] sm:$0x3] %v215
                %v217 = vld [vmem:[%s117 + $0xc2] sm:$0x3]
                %218 = vst [vmem:[%s118 + $0x62] sm:$0x3] %v217
                %v219 = vld [vmem:[%s117 + $0xc4] sm:$0x3]
                %220 = vst [vmem:[%s118 + $0x64] sm:$0x3] %v219
                %v221 = vld [vmem:[%s117 + $0xc6] sm:$0x3]
                %222 = vst [vmem:[%s118 + $0x66] sm:$0x3] %v221
                %v223 = vld [vmem:[%s117 + $0xc8] sm:$0x3]
                %224 = vst [vmem:[%s118 + $0x68] sm:$0x3] %v223
                %v225 = vld [vmem:[%s117 + $0xca] sm:$0x3]
                %226 = vst [vmem:[%s118 + $0x6a] sm:$0x3] %v225
                %v227 = vld [vmem:[%s117 + $0xcc] sm:$0x3]
                %228 = vst [vmem:[%s118 + $0x6c] sm:$0x3] %v227
                %v229 = vld [vmem:[%s117 + $0xce] sm:$0x3]
                %230 = vst [vmem:[%s118 + $0x6e] sm:$0x3] %v229
                %v231 = vld [vmem:[%s117 + $0xe0] sm:$0x3]
                %232 = vst [vmem:[%s118 + $0x70] sm:$0x3] %v231
                %v233 = vld [vmem:[%s117 + $0xe2] sm:$0x3]
                %234 = vst [vmem:[%s118 + $0x72] sm:$0x3] %v233
                %v235 = vld [vmem:[%s117 + $0xe4] sm:$0x3]
                %236 = vst [vmem:[%s118 + $0x74] sm:$0x3] %v235
                %v237 = vld [vmem:[%s117 + $0xe6] sm:$0x3]
                %238 = vst [vmem:[%s118 + $0x76] sm:$0x3] %v237
                %v239 = vld [vmem:[%s117 + $0xe8] sm:$0x3]
                %240 = vst [vmem:[%s118 + $0x78] sm:$0x3] %v239
                %v241 = vld [vmem:[%s117 + $0xea] sm:$0x3]
                %242 = vst [vmem:[%s118 + $0x7a] sm:$0x3] %v241
                %v243 = vld [vmem:[%s117 + $0xec] sm:$0x3]
                %244 = vst [vmem:[%s118 + $0x7c] sm:$0x3] %v243
                %v245 = vld [vmem:[%s117 + $0xee] sm:$0x3]
                %246 = vst [vmem:[%s118 + $0x7e] sm:$0x3] %v245
              $region37: #{down_forward.5} parent=31 // loop_footer
                %s116 = sadd.s32 1, %s112
              $region38: #{down_forward.5} parent=31 // loop_footer_branch
                %111 = sbr.rel target = $region34
              $region39: #{down_forward.5} parent=31 // loop_exit
                _
            $region32: #{down_forward.5} parent=23 // pred_fallthru
              _
          $region24: #{down_forward.5} parent=19 // pred_fallthru
            _
          %394 = vnop
        $region20: #{down_forward.5} parent=15 // pred_fallthru
          _
      $region16: #{down_forward.5} parent=5 // pred_fallthru
        _
      %p395 = scmp.le.s32.totalorder 1, %s7
      %p396 = scmp.lt.s32.totalorder %s7, 5
      %p397 = pnand %p395, %p396
      %p398 = pneg %p397
      // Predicated region
      $region58: #{down_forward.5} parent=5 // pred_check
        _
      $region59: #{down_forward.5} parent=5 // pred_check_branch
        %400 = sbr.rel (%p397) target = $region61
      $region60: #{down_forward.5} parent=5 // pred_region
        %s401 = ssub.s32 %s7, 1
        %s402 = sand.u32 %s34, 1
        %s403 = sand.u32 %s34, 1
        %s404 = smul.addr %s403, 128
        %s405 = scalar_lea.vmem [#allocation2], %s404
        // Predicated region
        $region62: #{down_forward.5} parent=60 // pred_check
          %p406 = pneg %p47
        $region63: #{down_forward.5} parent=60 // pred_check_branch
          %408 = sbr.rel (%p406) target = $region65
        $region64: #{down_forward.5} parent=60 // pred_region
          _
        $region65: #{down_forward.5} parent=60 // pred_fallthru
          _
        %s409 = sand.u32 %s34, 1
        %s410 = sand.u32 %s34, 1
        %s411 = smul.addr %s410, 128
        %s412 = scalar_lea.vmem [#allocation2], %s411
        %p413 = pneg %p47
        %p414 = pneg %p44
        %p415 = pneg %p73
        %p416 = pneg %p70
        %p417 = scmp.lt.s32.totalorder %s16, 1
        %s418 = scalar_select %p417, %s16, 1
        %s419 = smul.addr %s418, 8
        %s420 = smul.addr %s419, 8
        %s421 = scalar_lea.vmem %s1, %s420
        %p422 = scmp.lt.s32.totalorder %s16, 1
        %s423 = scalar_select %p422, %s16, 1
        %s424 = smul.addr %s423, 8
        %s425 = smul.addr %s424, 8
        %s426 = scalar_lea.vmem %s1, %s425
        %v427 = vld [vmem:[%s405] sm:$0x3]
        %v428 = vld [vmem:[%s405 + $0x2] sm:$0x3]
        %v429 = vld [vmem:[%s405 + $0x4] sm:$0x3]
        %v430 = vld [vmem:[%s405 + $0x6] sm:$0x3]
        %v431 = vld [vmem:[%s405 + $0x8] sm:$0x3]
        %v432 = vld [vmem:[%s405 + $0xa] sm:$0x3]
        %v433 = vld [vmem:[%s405 + $0xc] sm:$0x3]
        %v434 = vld [vmem:[%s405 + $0xe] sm:$0x3]
        %v435 = vld [vmem:[%s405 + $0x10] sm:$0x3]
        %v436 = vld [vmem:[%s405 + $0x12] sm:$0x3]
        %v437 = vld [vmem:[%s405 + $0x14] sm:$0x3]
        %v438 = vld [vmem:[%s405 + $0x16] sm:$0x3]
        %v439 = vld [vmem:[%s405 + $0x18] sm:$0x3]
        %v440 = vld [vmem:[%s405 + $0x1a] sm:$0x3]
        %v441 = vld [vmem:[%s405 + $0x1c] sm:$0x3]
        %v442 = vld [vmem:[%s405 + $0x1e] sm:$0x3]
        %v443 = vld [vmem:[%s405 + $0x20] sm:$0x3]
        %v444 = vld [vmem:[%s405 + $0x22] sm:$0x3]
        %v445 = vld [vmem:[%s405 + $0x24] sm:$0x3]
        %v446 = vld [vmem:[%s405 + $0x26] sm:$0x3]
        %v447 = vld [vmem:[%s405 + $0x28] sm:$0x3]
        %v448 = vld [vmem:[%s405 + $0x2a] sm:$0x3]
        %v449 = vld [vmem:[%s405 + $0x2c] sm:$0x3]
        %v450 = vld [vmem:[%s405 + $0x2e] sm:$0x3]
        %v451 = vld [vmem:[%s405 + $0x30] sm:$0x3]
        %v452 = vld [vmem:[%s405 + $0x32] sm:$0x3]
        %v453 = vld [vmem:[%s405 + $0x34] sm:$0x3]
        %v454 = vld [vmem:[%s405 + $0x36] sm:$0x3]
        %v455 = vld [vmem:[%s405 + $0x38] sm:$0x3]
        %v456 = vld [vmem:[%s405 + $0x3a] sm:$0x3]
        %v457 = vld [vmem:[%s405 + $0x3c] sm:$0x3]
        %v458 = vld [vmem:[%s405 + $0x3e] sm:$0x3]
        %v459 = vld [vmem:[%s405 + $0x40] sm:$0x3]
        %v460 = vld [vmem:[%s405 + $0x42] sm:$0x3]
        %v461 = vld [vmem:[%s405 + $0x44] sm:$0x3]
        %v462 = vld [vmem:[%s405 + $0x46] sm:$0x3]
        %v463 = vld [vmem:[%s405 + $0x48] sm:$0x3]
        %v464 = vld [vmem:[%s405 + $0x4a] sm:$0x3]
        %v465 = vld [vmem:[%s405 + $0x4c] sm:$0x3]
        %v466 = vld [vmem:[%s405 + $0x4e] sm:$0x3]
        %v467 = vld [vmem:[%s405 + $0x50] sm:$0x3]
        %v468 = vld [vmem:[%s405 + $0x52] sm:$0x3]
        %v469 = vld [vmem:[%s405 + $0x54] sm:$0x3]
        %v470 = vld [vmem:[%s405 + $0x56] sm:$0x3]
        %v471 = vld [vmem:[%s405 + $0x58] sm:$0x3]
        %v472 = vld [vmem:[%s405 + $0x5a] sm:$0x3]
        %v473 = vld [vmem:[%s405 + $0x5c] sm:$0x3]
        %v474 = vld [vmem:[%s405 + $0x5e] sm:$0x3]
        %v475 = vld [vmem:[%s405 + $0x60] sm:$0x3]
        %v476 = vld [vmem:[%s405 + $0x62] sm:$0x3]
        %v477 = vld [vmem:[%s405 + $0x64] sm:$0x3]
        %v478 = vld [vmem:[%s405 + $0x66] sm:$0x3]
        %v479 = vld [vmem:[%s405 + $0x68] sm:$0x3]
        %v480 = vld [vmem:[%s405 + $0x6a] sm:$0x3]
        %v481 = vld [vmem:[%s405 + $0x6c] sm:$0x3]
        %v482 = vld [vmem:[%s405 + $0x6e] sm:$0x3]
        %v483 = vld [vmem:[%s405 + $0x70] sm:$0x3]
        %v484 = vld [vmem:[%s405 + $0x72] sm:$0x3]
        %v485 = vld [vmem:[%s405 + $0x74] sm:$0x3]
        %v486 = vld [vmem:[%s405 + $0x76] sm:$0x3]
        %v487 = vld [vmem:[%s405 + $0x78] sm:$0x3]
        %v488 = vld [vmem:[%s405 + $0x7a] sm:$0x3]
        %v489 = vld [vmem:[%s405 + $0x7c] sm:$0x3]
        %v490 = vld [vmem:[%s405 + $0x7e] sm:$0x3]
        %vm491 = vcmask 25600
        %v492 = vsel %vm491, %v427, -inf
        %v493 = vrot.slane %v492, 4
        %v494 = vmax.f32 %v492, %v493
        %v495 = vrot.slane %v494, 2
        %v496 = vmax.f32 %v494, %v495
        %v497 = vrot.slane %v496, 1
        %v498 = vmax.f32 %v496, %v497
        %v499 = vsel %vm491, %v428, -inf
        %v500 = vrot.slane %v499, 4
        %v501 = vmax.f32 %v499, %v500
        %v502 = vrot.slane %v501, 2
        %v503 = vmax.f32 %v501, %v502
        %v504 = vrot.slane %v503, 1
        %v505 = vmax.f32 %v503, %v504
        %v506 = vsel %vm491, %v429, -inf
        %v507 = vrot.slane %v506, 4
        %v508 = vmax.f32 %v506, %v507
        %v509 = vrot.slane %v508, 2
        %v510 = vmax.f32 %v508, %v509
        %v511 = vrot.slane %v510, 1
        %v512 = vmax.f32 %v510, %v511
        %v513 = vsel %vm491, %v430, -inf
        %v514 = vrot.slane %v513, 4
        %v515 = vmax.f32 %v513, %v514
        %v516 = vrot.slane %v515, 2
        %v517 = vmax.f32 %v515, %v516
        %v518 = vrot.slane %v517, 1
        %v519 = vmax.f32 %v517, %v518
        %v520 = vsel %vm491, %v431, -inf
        %v521 = vrot.slane %v520, 4
        %v522 = vmax.f32 %v520, %v521
        %v523 = vrot.slane %v522, 2
        %v524 = vmax.f32 %v522, %v523
        %v525 = vrot.slane %v524, 1
        %v526 = vmax.f32 %v524, %v525
        %v527 = vsel %vm491, %v432, -inf
        %v528 = vrot.slane %v527, 4
        %v529 = vmax.f32 %v527, %v528
        %v530 = vrot.slane %v529, 2
        %v531 = vmax.f32 %v529, %v530
        %v532 = vrot.slane %v531, 1
        %v533 = vmax.f32 %v531, %v532
        %v534 = vsel %vm491, %v433, -inf
        %v535 = vrot.slane %v534, 4
        %v536 = vmax.f32 %v534, %v535
        %v537 = vrot.slane %v536, 2
        %v538 = vmax.f32 %v536, %v537
        %v539 = vrot.slane %v538, 1
        %v540 = vmax.f32 %v538, %v539
        %v541 = vsel %vm491, %v434, -inf
        %v542 = vrot.slane %v541, 4
        %v543 = vmax.f32 %v541, %v542
        %v544 = vrot.slane %v543, 2
        %v545 = vmax.f32 %v543, %v544
        %v546 = vrot.slane %v545, 1
        %v547 = vmax.f32 %v545, %v546
        %v548 = vsel %vm491, %v435, -inf
        %v549 = vrot.slane %v548, 4
        %v550 = vmax.f32 %v548, %v549
        %v551 = vrot.slane %v550, 2
        %v552 = vmax.f32 %v550, %v551
        %v553 = vrot.slane %v552, 1
        %v554 = vmax.f32 %v552, %v553
        %v555 = vsel %vm491, %v436, -inf
        %v556 = vrot.slane %v555, 4
        %v557 = vmax.f32 %v555, %v556
        %v558 = vrot.slane %v557, 2
        %v559 = vmax.f32 %v557, %v558
        %v560 = vrot.slane %v559, 1
        %v561 = vmax.f32 %v559, %v560
        %v562 = vsel %vm491, %v437, -inf
        %v563 = vrot.slane %v562, 4
        %v564 = vmax.f32 %v562, %v563
        %v565 = vrot.slane %v564, 2
        %v566 = vmax.f32 %v564, %v565
        %v567 = vrot.slane %v566, 1
        %v568 = vmax.f32 %v566, %v567
        %v569 = vsel %vm491, %v438, -inf
        %v570 = vrot.slane %v569, 4
        %v571 = vmax.f32 %v569, %v570
        %v572 = vrot.slane %v571, 2
        %v573 = vmax.f32 %v571, %v572
        %v574 = vrot.slane %v573, 1
        %v575 = vmax.f32 %v573, %v574
        %v576 = vsel %vm491, %v439, -inf
        %v577 = vrot.slane %v576, 4
        %v578 = vmax.f32 %v576, %v577
        %v579 = vrot.slane %v578, 2
        %v580 = vmax.f32 %v578, %v579
        %v581 = vrot.slane %v580, 1
        %v582 = vmax.f32 %v580, %v581
        %v583 = vsel %vm491, %v440, -inf
        %v584 = vrot.slane %v583, 4
        %v585 = vmax.f32 %v583, %v584
        %v586 = vrot.slane %v585, 2
        %v587 = vmax.f32 %v585, %v586
        %v588 = vrot.slane %v587, 1
        %v589 = vmax.f32 %v587, %v588
        %v590 = vsel %vm491, %v441, -inf
        %v591 = vrot.slane %v590, 4
        %v592 = vmax.f32 %v590, %v591
        %v593 = vrot.slane %v592, 2
        %v594 = vmax.f32 %v592, %v593
        %v595 = vrot.slane %v594, 1
        %v596 = vmax.f32 %v594, %v595
        %v597 = vsel %vm491, %v442, -inf
        %v598 = vrot.slane %v597, 4
        %v599 = vmax.f32 %v597, %v598
        %v600 = vrot.slane %v599, 2
        %v601 = vmax.f32 %v599, %v600
        %v602 = vrot.slane %v601, 1
        %v603 = vmax.f32 %v601, %v602
        %v604 = vsel %vm491, %v443, -inf
        %v605 = vrot.slane %v604, 4
        %v606 = vmax.f32 %v604, %v605
        %v607 = vrot.slane %v606, 2
        %v608 = vmax.f32 %v606, %v607
        %v609 = vrot.slane %v608, 1
        %v610 = vmax.f32 %v608, %v609
        %v611 = vsel %vm491, %v444, -inf
        %v612 = vrot.slane %v611, 4
        %v613 = vmax.f32 %v611, %v612
        %v614 = vrot.slane %v613, 2
        %v615 = vmax.f32 %v613, %v614
        %v616 = vrot.slane %v615, 1
        %v617 = vmax.f32 %v615, %v616
        %v618 = vsel %vm491, %v445, -inf
        %v619 = vrot.slane %v618, 4
        %v620 = vmax.f32 %v618, %v619
        %v621 = vrot.slane %v620, 2
        %v622 = vmax.f32 %v620, %v621
        %v623 = vrot.slane %v622, 1
        %v624 = vmax.f32 %v622, %v623
        %v625 = vsel %vm491, %v446, -inf
        %v626 = vrot.slane %v625, 4
        %v627 = vmax.f32 %v625, %v626
        %v628 = vrot.slane %v627, 2
        %v629 = vmax.f32 %v627, %v628
        %v630 = vrot.slane %v629, 1
        %v631 = vmax.f32 %v629, %v630
        %v632 = vsel %vm491, %v447, -inf
        %v633 = vrot.slane %v632, 4
        %v634 = vmax.f32 %v632, %v633
        %v635 = vrot.slane %v634, 2
        %v636 = vmax.f32 %v634, %v635
        %v637 = vrot.slane %v636, 1
        %v638 = vmax.f32 %v636, %v637
        %v639 = vsel %vm491, %v448, -inf
        %v640 = vrot.slane %v639, 4
        %v641 = vmax.f32 %v639, %v640
        %v642 = vrot.slane %v641, 2
        %v643 = vmax.f32 %v641, %v642
        %v644 = vrot.slane %v643, 1
        %v645 = vmax.f32 %v643, %v644
        %v646 = vsel %vm491, %v449, -inf
        %v647 = vrot.slane %v646, 4
        %v648 = vmax.f32 %v646, %v647
        %v649 = vrot.slane %v648, 2
        %v650 = vmax.f32 %v648, %v649
        %v651 = vrot.slane %v650, 1
        %v652 = vmax.f32 %v650, %v651
        %v653 = vsel %vm491, %v450, -inf
        %v654 = vrot.slane %v653, 4
        %v655 = vmax.f32 %v653, %v654
        %v656 = vrot.slane %v655, 2
        %v657 = vmax.f32 %v655, %v656
        %v658 = vrot.slane %v657, 1
        %v659 = vmax.f32 %v657, %v658
        %v660 = vsel %vm491, %v451, -inf
        %v661 = vrot.slane %v660, 4
        %v662 = vmax.f32 %v660, %v661
        %v663 = vrot.slane %v662, 2
        %v664 = vmax.f32 %v662, %v663
        %v665 = vrot.slane %v664, 1
        %v666 = vmax.f32 %v664, %v665
        %v667 = vsel %vm491, %v452, -inf
        %v668 = vrot.slane %v667, 4
        %v669 = vmax.f32 %v667, %v668
        %v670 = vrot.slane %v669, 2
        %v671 = vmax.f32 %v669, %v670
        %v672 = vrot.slane %v671, 1
        %v673 = vmax.f32 %v671, %v672
        %v674 = vsel %vm491, %v453, -inf
        %v675 = vrot.slane %v674, 4
        %v676 = vmax.f32 %v674, %v675
        %v677 = vrot.slane %v676, 2
        %v678 = vmax.f32 %v676, %v677
        %v679 = vrot.slane %v678, 1
        %v680 = vmax.f32 %v678, %v679
        %v681 = vsel %vm491, %v454, -inf
        %v682 = vrot.slane %v681, 4
        %v683 = vmax.f32 %v681, %v682
        %v684 = vrot.slane %v683, 2
        %v685 = vmax.f32 %v683, %v684
        %v686 = vrot.slane %v685, 1
        %v687 = vmax.f32 %v685, %v686
        %v688 = vsel %vm491, %v455, -inf
        %v689 = vrot.slane %v688, 4
        %v690 = vmax.f32 %v688, %v689
        %v691 = vrot.slane %v690, 2
        %v692 = vmax.f32 %v690, %v691
        %v693 = vrot.slane %v692, 1
        %v694 = vmax.f32 %v692, %v693
        %v695 = vsel %vm491, %v456, -inf
        %v696 = vrot.slane %v695, 4
        %v697 = vmax.f32 %v695, %v696
        %v698 = vrot.slane %v697, 2
        %v699 = vmax.f32 %v697, %v698
        %v700 = vrot.slane %v699, 1
        %v701 = vmax.f32 %v699, %v700
        %v702 = vsel %vm491, %v457, -inf
        %v703 = vrot.slane %v702, 4
        %v704 = vmax.f32 %v702, %v703
        %v705 = vrot.slane %v704, 2
        %v706 = vmax.f32 %v704, %v705
        %v707 = vrot.slane %v706, 1
        %v708 = vmax.f32 %v706, %v707
        %v709 = vsel %vm491, %v458, -inf
        %v710 = vrot.slane %v709, 4
        %v711 = vmax.f32 %v709, %v710
        %v712 = vrot.slane %v711, 2
        %v713 = vmax.f32 %v711, %v712
        %v714 = vrot.slane %v713, 1
        %v715 = vmax.f32 %v713, %v714
        %v716 = vsel %vm491, %v459, -inf
        %v717 = vrot.slane %v716, 4
        %v718 = vmax.f32 %v716, %v717
        %v719 = vrot.slane %v718, 2
        %v720 = vmax.f32 %v718, %v719
        %v721 = vrot.slane %v720, 1
        %v722 = vmax.f32 %v720, %v721
        %v723 = vsel %vm491, %v460, -inf
        %v724 = vrot.slane %v723, 4
        %v725 = vmax.f32 %v723, %v724
        %v726 = vrot.slane %v725, 2
        %v727 = vmax.f32 %v725, %v726
        %v728 = vrot.slane %v727, 1
        %v729 = vmax.f32 %v727, %v728
        %v730 = vsel %vm491, %v461, -inf
        %v731 = vrot.slane %v730, 4
        %v732 = vmax.f32 %v730, %v731
        %v733 = vrot.slane %v732, 2
        %v734 = vmax.f32 %v732, %v733
        %v735 = vrot.slane %v734, 1
        %v736 = vmax.f32 %v734, %v735
        %v737 = vsel %vm491, %v462, -inf
        %v738 = vrot.slane %v737, 4
        %v739 = vmax.f32 %v737, %v738
        %v740 = vrot.slane %v739, 2
        %v741 = vmax.f32 %v739, %v740
        %v742 = vrot.slane %v741, 1
        %v743 = vmax.f32 %v741, %v742
        %v744 = vsel %vm491, %v463, -inf
        %v745 = vrot.slane %v744, 4
        %v746 = vmax.f32 %v744, %v745
        %v747 = vrot.slane %v746, 2
        %v748 = vmax.f32 %v746, %v747
        %v749 = vrot.slane %v748, 1
        %v750 = vmax.f32 %v748, %v749
        %v751 = vsel %vm491, %v464, -inf
        %v752 = vrot.slane %v751, 4
        %v753 = vmax.f32 %v751, %v752
        %v754 = vrot.slane %v753, 2
        %v755 = vmax.f32 %v753, %v754
        %v756 = vrot.slane %v755, 1
        %v757 = vmax.f32 %v755, %v756
        %v758 = vsel %vm491, %v465, -inf
        %v759 = vrot.slane %v758, 4
        %v760 = vmax.f32 %v758, %v759
        %v761 = vrot.slane %v760, 2
        %v762 = vmax.f32 %v760, %v761
        %v763 = vrot.slane %v762, 1
        %v764 = vmax.f32 %v762, %v763
        %v765 = vsel %vm491, %v466, -inf
        %v766 = vrot.slane %v765, 4
        %v767 = vmax.f32 %v765, %v766
        %v768 = vrot.slane %v767, 2
        %v769 = vmax.f32 %v767, %v768
        %v770 = vrot.slane %v769, 1
        %v771 = vmax.f32 %v769, %v770
        %v772 = vsel %vm491, %v467, -inf
        %v773 = vrot.slane %v772, 4
        %v774 = vmax.f32 %v772, %v773
        %v775 = vrot.slane %v774, 2
        %v776 = vmax.f32 %v774, %v775
        %v777 = vrot.slane %v776, 1
        %v778 = vmax.f32 %v776, %v777
        %v779 = vsel %vm491, %v468, -inf
        %v780 = vrot.slane %v779, 4
        %v781 = vmax.f32 %v779, %v780
        %v782 = vrot.slane %v781, 2
        %v783 = vmax.f32 %v781, %v782
        %v784 = vrot.slane %v783, 1
        %v785 = vmax.f32 %v783, %v784
        %v786 = vsel %vm491, %v469, -inf
        %v787 = vrot.slane %v786, 4
        %v788 = vmax.f32 %v786, %v787
        %v789 = vrot.slane %v788, 2
        %v790 = vmax.f32 %v788, %v789
        %v791 = vrot.slane %v790, 1
        %v792 = vmax.f32 %v790, %v791
        %v793 = vsel %vm491, %v470, -inf
        %v794 = vrot.slane %v793, 4
        %v795 = vmax.f32 %v793, %v794
        %v796 = vrot.slane %v795, 2
        %v797 = vmax.f32 %v795, %v796
        %v798 = vrot.slane %v797, 1
        %v799 = vmax.f32 %v797, %v798
        %v800 = vsel %vm491, %v471, -inf
        %v801 = vrot.slane %v800, 4
        %v802 = vmax.f32 %v800, %v801
        %v803 = vrot.slane %v802, 2
        %v804 = vmax.f32 %v802, %v803
        %v805 = vrot.slane %v804, 1
        %v806 = vmax.f32 %v804, %v805
        %v807 = vsel %vm491, %v472, -inf
        %v808 = vrot.slane %v807, 4
        %v809 = vmax.f32 %v807, %v808
        %v810 = vrot.slane %v809, 2
        %v811 = vmax.f32 %v809, %v810
        %v812 = vrot.slane %v811, 1
        %v813 = vmax.f32 %v811, %v812
        %v814 = vsel %vm491, %v473, -inf
        %v815 = vrot.slane %v814, 4
        %v816 = vmax.f32 %v814, %v815
        %v817 = vrot.slane %v816, 2
        %v818 = vmax.f32 %v816, %v817
        %v819 = vrot.slane %v818, 1
        %v820 = vmax.f32 %v818, %v819
        %v821 = vsel %vm491, %v474, -inf
        %v822 = vrot.slane %v821, 4
        %v823 = vmax.f32 %v821, %v822
        %v824 = vrot.slane %v823, 2
        %v825 = vmax.f32 %v823, %v824
        %v826 = vrot.slane %v825, 1
        %v827 = vmax.f32 %v825, %v826
        %v828 = vsel %vm491, %v475, -inf
        %v829 = vrot.slane %v828, 4
        %v830 = vmax.f32 %v828, %v829
        %v831 = vrot.slane %v830, 2
        %v832 = vmax.f32 %v830, %v831
        %v833 = vrot.slane %v832, 1
        %v834 = vmax.f32 %v832, %v833
        %v835 = vsel %vm491, %v476, -inf
        %v836 = vrot.slane %v835, 4
        %v837 = vmax.f32 %v835, %v836
        %v838 = vrot.slane %v837, 2
        %v839 = vmax.f32 %v837, %v838
        %v840 = vrot.slane %v839, 1
        %v841 = vmax.f32 %v839, %v840
        %v842 = vsel %vm491, %v477, -inf
        %v843 = vrot.slane %v842, 4
        %v844 = vmax.f32 %v842, %v843
        %v845 = vrot.slane %v844, 2
        %v846 = vmax.f32 %v844, %v845
        %v847 = vrot.slane %v846, 1
        %v848 = vmax.f32 %v846, %v847
        %v849 = vsel %vm491, %v478, -inf
        %v850 = vrot.slane %v849, 4
        %v851 = vmax.f32 %v849, %v850
        %v852 = vrot.slane %v851, 2
        %v853 = vmax.f32 %v851, %v852
        %v854 = vrot.slane %v853, 1
        %v855 = vmax.f32 %v853, %v854
        %v856 = vsel %vm491, %v479, -inf
        %v857 = vrot.slane %v856, 4
        %v858 = vmax.f32 %v856, %v857
        %v859 = vrot.slane %v858, 2
        %v860 = vmax.f32 %v858, %v859
        %v861 = vrot.slane %v860, 1
        %v862 = vmax.f32 %v860, %v861
        %v863 = vsel %vm491, %v480, -inf
        %v864 = vrot.slane %v863, 4
        %v865 = vmax.f32 %v863, %v864
        %v866 = vrot.slane %v865, 2
        %v867 = vmax.f32 %v865, %v866
        %v868 = vrot.slane %v867, 1
        %v869 = vmax.f32 %v867, %v868
        %v870 = vsel %vm491, %v481, -inf
        %v871 = vrot.slane %v870, 4
        %v872 = vmax.f32 %v870, %v871
        %v873 = vrot.slane %v872, 2
        %v874 = vmax.f32 %v872, %v873
        %v875 = vrot.slane %v874, 1
        %v876 = vmax.f32 %v874, %v875
        %v877 = vsel %vm491, %v482, -inf
        %v878 = vrot.slane %v877, 4
        %v879 = vmax.f32 %v877, %v878
        %v880 = vrot.slane %v879, 2
        %v881 = vmax.f32 %v879, %v880
        %v882 = vrot.slane %v881, 1
        %v883 = vmax.f32 %v881, %v882
        %v884 = vsel %vm491, %v483, -inf
        %v885 = vrot.slane %v884, 4
        %v886 = vmax.f32 %v884, %v885
        %v887 = vrot.slane %v886, 2
        %v888 = vmax.f32 %v886, %v887
        %v889 = vrot.slane %v888, 1
        %v890 = vmax.f32 %v888, %v889
        %v891 = vsel %vm491, %v484, -inf
        %v892 = vrot.slane %v891, 4
        %v893 = vmax.f32 %v891, %v892
        %v894 = vrot.slane %v893, 2
        %v895 = vmax.f32 %v893, %v894
        %v896 = vrot.slane %v895, 1
        %v897 = vmax.f32 %v895, %v896
        %v898 = vsel %vm491, %v485, -inf
        %v899 = vrot.slane %v898, 4
        %v900 = vmax.f32 %v898, %v899
        %v901 = vrot.slane %v900, 2
        %v902 = vmax.f32 %v900, %v901
        %v903 = vrot.slane %v902, 1
        %v904 = vmax.f32 %v902, %v903
        %v905 = vsel %vm491, %v486, -inf
        %v906 = vrot.slane %v905, 4
        %v907 = vmax.f32 %v905, %v906
        %v908 = vrot.slane %v907, 2
        %v909 = vmax.f32 %v907, %v908
        %v910 = vrot.slane %v909, 1
        %v911 = vmax.f32 %v909, %v910
        %v912 = vsel %vm491, %v487, -inf
        %v913 = vrot.slane %v912, 4
        %v914 = vmax.f32 %v912, %v913
        %v915 = vrot.slane %v914, 2
        %v916 = vmax.f32 %v914, %v915
        %v917 = vrot.slane %v916, 1
        %v918 = vmax.f32 %v916, %v917
        %v919 = vsel %vm491, %v488, -inf
        %v920 = vrot.slane %v919, 4
        %v921 = vmax.f32 %v919, %v920
        %v922 = vrot.slane %v921, 2
        %v923 = vmax.f32 %v921, %v922
        %v924 = vrot.slane %v923, 1
        %v925 = vmax.f32 %v923, %v924
        %v926 = vsel %vm491, %v489, -inf
        %v927 = vrot.slane %v926, 4
        %v928 = vmax.f32 %v926, %v927
        %v929 = vrot.slane %v928, 2
        %v930 = vmax.f32 %v928, %v929
        %v931 = vrot.slane %v930, 1
        %v932 = vmax.f32 %v930, %v931
        %v933 = vsel %vm491, %v490, -inf
        %v934 = vrot.slane %v933, 4
        %v935 = vmax.f32 %v933, %v934
        %v936 = vrot.slane %v935, 2
        %v937 = vmax.f32 %v935, %v936
        %v938 = vrot.slane %v937, 1
        %v939 = vmax.f32 %v937, %v938
        %p940 = scmp.eq.s32.totalorder %s17, 0
        // Predicated region
        $region66: #{down_forward.5} parent=60 // pred_check
          %p941 = pneg %p940
        $region67: #{down_forward.5} parent=60 // pred_check_branch
          %943 = sbr.rel (%p941) target = $region69
        $region68: #{down_forward.5} parent=60 // pred_region
          %944 = vst [vmem:[%s426] sm:$0xff] 0.0
          %945 = vst [vmem:[%s426 + $0x8] sm:$0xff] 0.0
          %946 = vst [vmem:[%s426 + $0x10] sm:$0xff] 0.0
          %947 = vst [vmem:[%s426 + $0x18] sm:$0xff] 0.0
          %948 = vst [vmem:[%s426 + $0x20] sm:$0xff] 0.0
          %949 = vst [vmem:[%s426 + $0x28] sm:$0xff] 0.0
          %950 = vst [vmem:[%s426 + $0x30] sm:$0xff] 0.0
          %951 = vst [vmem:[%s426 + $0x38] sm:$0xff] 0.0
          %vm1016 = vcmask 1041409
          %v1017 = vsel %vm1016, %v505, %v498
          %vm1018 = vcmask 1042434
          %v1019 = vsel %vm1018, %v512, %v1017
          %vm1020 = vcmask 1043459
          %v1021 = vsel %vm1020, %v519, %v1019
          %vm1022 = vcmask 1044484
          %v1023 = vsel %vm1022, %v526, %v1021
          %vm1024 = vcmask 1045509
          %v1025 = vsel %vm1024, %v533, %v1023
          %vm1026 = vcmask 1046534
          %v1027 = vsel %vm1026, %v540, %v1025
          %vm1028 = vcmask 1047559
          %v1029 = vsel %vm1028, %v547, %v1027
          %v1030 = vsel %vm1016, %v561, %v554
          %v1031 = vsel %vm1018, %v568, %v1030
          %v1032 = vsel %vm1020, %v575, %v1031
          %v1033 = vsel %vm1022, %v582, %v1032
          %v1034 = vsel %vm1024, %v589, %v1033
          %v1035 = vsel %vm1026, %v596, %v1034
          %v1036 = vsel %vm1028, %v603, %v1035
          %v1037 = vsel %vm1016, %v617, %v610
          %v1038 = vsel %vm1018, %v624, %v1037
          %v1039 = vsel %vm1020, %v631, %v1038
          %v1040 = vsel %vm1022, %v638, %v1039
          %v1041 = vsel %vm1024, %v645, %v1040
          %v1042 = vsel %vm1026, %v652, %v1041
          %v1043 = vsel %vm1028, %v659, %v1042
          %v1044 = vsel %vm1016, %v673, %v666
          %v1045 = vsel %vm1018, %v680, %v1044
          %v1046 = vsel %vm1020, %v687, %v1045
          %v1047 = vsel %vm1022, %v694, %v1046
          %v1048 = vsel %vm1024, %v701, %v1047
          %v1049 = vsel %vm1026, %v708, %v1048
          %v1050 = vsel %vm1028, %v715, %v1049
          %v1051 = vsel %vm1016, %v729, %v722
          %v1052 = vsel %vm1018, %v736, %v1051
          %v1053 = vsel %vm1020, %v743, %v1052
          %v1054 = vsel %vm1022, %v750, %v1053
          %v1055 = vsel %vm1024, %v757, %v1054
          %v1056 = vsel %vm1026, %v764, %v1055
          %v1057 = vsel %vm1028, %v771, %v1056
          %v1058 = vsel %vm1016, %v785, %v778
          %v1059 = vsel %vm1018, %v792, %v1058
          %v1060 = vsel %vm1020, %v799, %v1059
          %v1061 = vsel %vm1022, %v806, %v1060
          %v1062 = vsel %vm1024, %v813, %v1061
          %v1063 = vsel %vm1026, %v820, %v1062
          %v1064 = vsel %vm1028, %v827, %v1063
          %v1065 = vsel %vm1016, %v841, %v834
          %v1066 = vsel %vm1018, %v848, %v1065
          %v1067 = vsel %vm1020, %v855, %v1066
          %v1068 = vsel %vm1022, %v862, %v1067
          %v1069 = vsel %vm1024, %v869, %v1068
          %v1070 = vsel %vm1026, %v876, %v1069
          %v1071 = vsel %vm1028, %v883, %v1070
          %v1072 = vsel %vm1016, %v897, %v890
          %v1073 = vsel %vm1018, %v904, %v1072
          %v1074 = vsel %vm1020, %v911, %v1073
          %v1075 = vsel %vm1022, %v918, %v1074
          %v1076 = vsel %vm1024, %v925, %v1075
          %v1077 = vsel %vm1026, %v932, %v1076
          %v1078 = vsel %vm1028, %v939, %v1077
          %vm1087 = vcmask 31744
          %1088 = vst.msk [vmem:[%s426] sm:$0xff] %vm1087, %v1029
          %1089 = vst.msk [vmem:[%s426 + $0x8] sm:$0xff] %vm1087, %v1036
          %1090 = vst.msk [vmem:[%s426 + $0x10] sm:$0xff] %vm1087, %v1043
          %1091 = vst.msk [vmem:[%s426 + $0x18] sm:$0xff] %vm1087, %v1050
          %1092 = vst.msk [vmem:[%s426 + $0x20] sm:$0xff] %vm1087, %v1057
          %1093 = vst.msk [vmem:[%s426 + $0x28] sm:$0xff] %vm1087, %v1064
          %1094 = vst.msk [vmem:[%s426 + $0x30] sm:$0xff] %vm1087, %v1071
          %1095 = vst.msk [vmem:[%s426 + $0x38] sm:$0xff] %vm1087, %v1078
        $region69: #{down_forward.5} parent=60 // pred_fallthru
          _
        %p1096 = scmp.eq.s32.totalorder %s17, 1
        // Predicated region
        $region70: #{down_forward.5} parent=60 // pred_check
          %p1097 = pneg %p1096
        $region71: #{down_forward.5} parent=60 // pred_check_branch
          %1099 = sbr.rel (%p1097) target = $region73
        $region72: #{down_forward.5} parent=60 // pred_region
          %v1100 = vld [vmem:[%s426] sm:$0xff]
          %v1101 = vld [vmem:[%s426 + $0x8] sm:$0xff]
          %v1102 = vld [vmem:[%s426 + $0x10] sm:$0xff]
          %v1103 = vld [vmem:[%s426 + $0x18] sm:$0xff]
          %v1104 = vld [vmem:[%s426 + $0x20] sm:$0xff]
          %v1105 = vld [vmem:[%s426 + $0x28] sm:$0xff]
          %v1106 = vld [vmem:[%s426 + $0x30] sm:$0xff]
          %v1107 = vld [vmem:[%s426 + $0x38] sm:$0xff]
          %vm1172 = vcmask 1041409
          %v1173 = vsel %vm1172, %v505, %v498
          %vm1174 = vcmask 1042434
          %v1175 = vsel %vm1174, %v512, %v1173
          %vm1176 = vcmask 1043459
          %v1177 = vsel %vm1176, %v519, %v1175
          %vm1178 = vcmask 1044484
          %v1179 = vsel %vm1178, %v526, %v1177
          %vm1180 = vcmask 1045509
          %v1181 = vsel %vm1180, %v533, %v1179
          %vm1182 = vcmask 1046534
          %v1183 = vsel %vm1182, %v540, %v1181
          %vm1184 = vcmask 1047559
          %v1185 = vsel %vm1184, %v547, %v1183
          %v1186 = vsel %vm1172, %v561, %v554
          %v1187 = vsel %vm1174, %v568, %v1186
          %v1188 = vsel %vm1176, %v575, %v1187
          %v1189 = vsel %vm1178, %v582, %v1188
          %v1190 = vsel %vm1180, %v589, %v1189
          %v1191 = vsel %vm1182, %v596, %v1190
          %v1192 = vsel %vm1184, %v603, %v1191
          %v1193 = vsel %vm1172, %v617, %v610
          %v1194 = vsel %vm1174, %v624, %v1193
          %v1195 = vsel %vm1176, %v631, %v1194
          %v1196 = vsel %vm1178, %v638, %v1195
          %v1197 = vsel %vm1180, %v645, %v1196
          %v1198 = vsel %vm1182, %v652, %v1197
          %v1199 = vsel %vm1184, %v659, %v1198
          %v1200 = vsel %vm1172, %v673, %v666
          %v1201 = vsel %vm1174, %v680, %v1200
          %v1202 = vsel %vm1176, %v687, %v1201
          %v1203 = vsel %vm1178, %v694, %v1202
          %v1204 = vsel %vm1180, %v701, %v1203
          %v1205 = vsel %vm1182, %v708, %v1204
          %v1206 = vsel %vm1184, %v715, %v1205
          %v1207 = vsel %vm1172, %v729, %v722
          %v1208 = vsel %vm1174, %v736, %v1207
          %v1209 = vsel %vm1176, %v743, %v1208
          %v1210 = vsel %vm1178, %v750, %v1209
          %v1211 = vsel %vm1180, %v757, %v1210
          %v1212 = vsel %vm1182, %v764, %v1211
          %v1213 = vsel %vm1184, %v771, %v1212
          %v1214 = vsel %vm1172, %v785, %v778
          %v1215 = vsel %vm1174, %v792, %v1214
          %v1216 = vsel %vm1176, %v799, %v1215
          %v1217 = vsel %vm1178, %v806, %v1216
          %v1218 = vsel %vm1180, %v813, %v1217
          %v1219 = vsel %vm1182, %v820, %v1218
          %v1220 = vsel %vm1184, %v827, %v1219
          %v1221 = vsel %vm1172, %v841, %v834
          %v1222 = vsel %vm1174, %v848, %v1221
          %v1223 = vsel %vm1176, %v855, %v1222
          %v1224 = vsel %vm1178, %v862, %v1223
          %v1225 = vsel %vm1180, %v869, %v1224
          %v1226 = vsel %vm1182, %v876, %v1225
          %v1227 = vsel %vm1184, %v883, %v1226
          %v1228 = vsel %vm1172, %v897, %v890
          %v1229 = vsel %vm1174, %v904, %v1228
          %v1230 = vsel %vm1176, %v911, %v1229
          %v1231 = vsel %vm1178, %v918, %v1230
          %v1232 = vsel %vm1180, %v925, %v1231
          %v1233 = vsel %vm1182, %v932, %v1232
          %v1234 = vsel %vm1184, %v939, %v1233
          %v1243 = vmax.f32 %v1100, %v1185
          %v1244 = vmax.f32 %v1101, %v1192
          %v1245 = vmax.f32 %v1102, %v1199
          %v1246 = vmax.f32 %v1103, %v1206
          %v1247 = vmax.f32 %v1104, %v1213
          %v1248 = vmax.f32 %v1105, %v1220
          %v1249 = vmax.f32 %v1106, %v1227
          %v1250 = vmax.f32 %v1107, %v1234
          %vm1251 = vcmask 31744
          %1252 = vst.msk [vmem:[%s426] sm:$0xff] %vm1251, %v1243
          %1253 = vst.msk [vmem:[%s426 + $0x8] sm:$0xff] %vm1251, %v1244
          %1254 = vst.msk [vmem:[%s426 + $0x10] sm:$0xff] %vm1251, %v1245
          %1255 = vst.msk [vmem:[%s426 + $0x18] sm:$0xff] %vm1251, %v1246
          %1256 = vst.msk [vmem:[%s426 + $0x20] sm:$0xff] %vm1251, %v1247
          %1257 = vst.msk [vmem:[%s426 + $0x28] sm:$0xff] %vm1251, %v1248
          %1258 = vst.msk [vmem:[%s426 + $0x30] sm:$0xff] %vm1251, %v1249
          %1259 = vst.msk [vmem:[%s426 + $0x38] sm:$0xff] %vm1251, %v1250
        $region73: #{down_forward.5} parent=60 // pred_fallthru
          _
        %p1260 = scmp.lt.s32.totalorder %s16, 1
        %s1261 = scalar_select %p1260, %s16, 1
        %s1262 = smul.addr %s1261, 8
        %s1263 = smul.addr %s1262, 8
        %s1264 = scalar_lea.vmem %s1, %s1263
        // Predicated region
        $region74: #{down_forward.5} parent=60 // pred_check
          %p1265 = pneg %p70
        $region75: #{down_forward.5} parent=60 // pred_check_branch
          %1267 = sbr.rel (%p1265) target = $region77
        $region76: #{down_forward.5} parent=60 // pred_region
          _
        $region77: #{down_forward.5} parent=60 // pred_fallthru
          _
      $region61: #{down_forward.5} parent=5 // pred_fallthru
        _
      %p1268 = scmp.le.s32.totalorder 2, %s7
      // Predicated region
      $region78: #{down_forward.5} parent=5 // pred_check
        %p1269 = pneg %p1268
      $region79: #{down_forward.5} parent=5 // pred_check_branch
        %1271 = sbr.rel (%p1269) target = $region81
      $region80: #{down_forward.5} parent=5 // pred_region
        %s1272 = ssub.s32 %s7, 2
        // Predicated region
        $region82: #{down_forward.5} parent=80 // pred_check
          %p1273 = pneg %p76
        $region83: #{down_forward.5} parent=80 // pred_check_branch
          %1275 = sbr.rel (%p1273) target = $region85
        $region84: #{down_forward.5} parent=80 // pred_region
          %p1276 = scmp.lt.s32.totalorder %s18, 1
          %s1277 = scalar_select %p1276, %s18, 1
          %s1278 = smul.addr %s1277, 8
          %s1279 = smul.addr %s1278, 8
          %s1280 = scalar_lea.vmem %s1, %s1279
        $region85: #{down_forward.5} parent=80 // pred_fallthru
          _
      $region81: #{down_forward.5} parent=5 // pred_fallthru
        _
    $region6: #{down_forward.5} parent=1 // loop_footer
      %s11 = sadd.s32 1, %s7
    $region7: #{down_forward.5} parent=1 // loop_footer_branch
      %6 = sbr.rel target = $region3
    $region8: #{down_forward.5} parent=1 // loop_exit
      _

// kernel: down_forward.6
$region0: #{down_forward.6}
  #allocation0 [shape = 'u32[]', space=smem, size = 0x4, offset = 0x4, fixed_abs, tag = 'smem constant byte address 0x4 - core index']
  #allocation1 [shape = 'u32[144,128]{1,0:T(1,128)}', space=vmem, size = 0x12000, scoped, tag = 'internal scratch']
  %s0 = inlined_call_operand.vmem [shape: f32[2,10,10,128], index: 0, kind: input, shape index: {}]
  %s1 = inlined_call_operand.vmem [shape: bf16[3,3,128,128], index: 1, kind: input, shape index: {}]
  %s2 = inlined_call_operand.vmem [shape: f32[2,8,8,128], index: 2, kind: output, shape index: {0}]
  %s3 = inlined_call_operand.vmem [shape: f32[2,8,2,128], index: 3, kind: output, shape index: {1}]
  %4 = xla_tuple %s2, %s3
  %s5 = sld [smem:[#allocation0]]
  $region57: #{down_forward.6} parent=0
    _
  %s7 = ssub.s32 1, %s5
  %s8 = scalar_select 0, %s7, %s5
  loop: start=0, step=1, limit=50
  $region2: #{down_forward.6} parent=0 // loop_pre_header
    _
  $region3: #{down_forward.6} parent=0 // loop_header
    %s10 = sphi 0, %s14
    %p11 = scmp.ge.s32.totalorder %s10, 50
    %s17 = sphi 0, %s36
    %s18 = sphi 0, %s32
    %s19 = sphi 0, %s28
    %s20 = sphi 0, %s17
    %s21 = sphi 0, %s18
    %s22 = sphi 0, %s19
    %s23 = sphi 0, %s20
    %s24 = sphi 0, %s21
    %s25 = sphi 0, %s22
    %s43 = sphi 0, %s45
    %s46 = sphi 0, %s43
    %s47 = sphi 0, %s46
    %s63 = sphi 0, %s47
    %s67 = sphi 0, %s67
    %s69 = sphi 0, %s67
    %s70 = sphi 0, %s69
    %s84 = sphi 0, %s70
    %s92 = sphi 0, %s94
    %s95 = sphi 0, %s92
    %s96 = sphi 0, %s95
    %s112 = sphi 0, %s96
    %s120 = sphi 0, %s122
    %s123 = sphi 0, %s120
    %s124 = sphi 0, %s123
    %s140 = sphi 0, %s124
  $region4: #{down_forward.6} parent=0 // loop_header_branch
    %13 = sbr.rel (%p11) target = $region8
  $region5: #{down_forward.6} parent=0 // loop_body
    %s15 = ssub.s32 %s10, 1
    %s16 = ssub.s32 %s10, 2
    %s26 = sadd.s32 1, %s19
    %p27 = scmp.ge.s32.totalorder %s26, 3
    %s28 = scalar_select %p27, 0, %s26
    %s29 = sadd.s32 1, %s18
    %s30 = scalar_select %p27, %s29, %s18
    %p31 = scmp.ge.s32.totalorder %s30, 8
    %s32 = scalar_select %p31, 0, %s30
    %s33 = sadd.s32 1, %s17
    %s34 = scalar_select %p31, %s33, %s17
    %p35 = scmp.ge.s32.totalorder %s34, 2
    %s36 = scalar_select %p35, 0, %s34
    %s37 = sadd.s32 %s18, %s19
    %s38 = sadd.s32 %s32, %s28
    %s39 = ssub.s32 %s17, %s36
    %s40 = ssub.s32 %s37, %s38
    %s41 = sor.u32 %s39, %s40
    %p42 = scmp.eq.s32.totalorder %s41, 0
    %s44 = sadd.s32 %s43, 1
    %s45 = scalar_select %p42, %s43, %s44
    %p48 = pneg %p42
    %p49 = scmp.eq.s32.totalorder %s10, 47
    %p50 = por %p48, %p49
    %p51 = scmp.ne.s32.totalorder %s43, %s46
    %p52 = scmp.eq.s32.totalorder %s10, 0
    %p53 = por %p51, %p52
    %p54 = scmp.ne.s32.totalorder %s43, %s46
    %p55 = scmp.eq.s32.totalorder %s15, 47
    %p56 = por %p54, %p55
    %p57 = scmp.ne.s32.totalorder %s46, %s47
    %p58 = scmp.eq.s32.totalorder %s15, 0
    %p59 = por %p57, %p58
    %p60 = scmp.ne.s32.totalorder %s46, %s47
    %p61 = scmp.eq.s32.totalorder %s16, 47
    %p62 = por %p60, %p61
    %p64 = scmp.ne.s32.totalorder %s47, %s63
    %p65 = scmp.eq.s32.totalorder %s16, 0
    %p66 = por %p64, %p65
    %s68 = sadd.s32 %s67, 1
    %p71 = scmp.eq.s32.totalorder %s10, 47
    %p72 = scmp.ne.s32.totalorder %s67, %s69
    %p73 = scmp.eq.s32.totalorder %s10, 0
    %p74 = por %p72, %p73
    %p75 = scmp.ne.s32.totalorder %s67, %s69
    %p76 = scmp.eq.s32.totalorder %s15, 47
    %p77 = por %p75, %p76
    %p78 = scmp.ne.s32.totalorder %s69, %s70
    %p79 = scmp.eq.s32.totalorder %s15, 0
    %p80 = por %p78, %p79
    %p81 = scmp.ne.s32.totalorder %s69, %s70
    %p82 = scmp.eq.s32.totalorder %s16, 47
    %p83 = por %p81, %p82
    %p85 = scmp.ne.s32.totalorder %s70, %s84
    %p86 = scmp.eq.s32.totalorder %s16, 0
    %p87 = por %p85, %p86
    %s88 = ssub.s32 %s17, %s36
    %s89 = ssub.s32 %s18, %s32
    %s90 = sor.u32 %s88, %s89
    %p91 = scmp.eq.s32.totalorder %s90, 0
    %s93 = sadd.s32 %s92, 1
    %s94 = scalar_select %p91, %s92, %s93
    %p97 = pneg %p91
    %p98 = scmp.eq.s32.totalorder %s10, 47
    %p99 = por %p97, %p98
    %p100 = scmp.ne.s32.totalorder %s92, %s95
    %p101 = scmp.eq.s32.totalorder %s10, 0
    %p102 = por %p100, %p101
    %p103 = scmp.ne.s32.totalorder %s92, %s95
    %p104 = scmp.eq.s32.totalorder %s15, 47
    %p105 = por %p103, %p104
    %p106 = scmp.ne.s32.totalorder %s95, %s96
    %p107 = scmp.eq.s32.totalorder %s15, 0
    %p108 = por %p106, %p107
    %p109 = scmp.ne.s32.totalorder %s95, %s96
    %p110 = scmp.eq.s32.totalorder %s16, 47
    %p111 = por %p109, %p110
    %p113 = scmp.ne.s32.totalorder %s96, %s112
    %p114 = scmp.eq.s32.totalorder %s16, 0
    %p115 = por %p113, %p114
    %s116 = ssub.s32 %s17, %s36
    %s117 = ssub.s32 %s18, %s32
    %s118 = sor.u32 %s116, %s117
    %p119 = scmp.eq.s32.totalorder %s118, 0
    %s121 = sadd.s32 %s120, 1
    %s122 = scalar_select %p119, %s120, %s121
    %p125 = pneg %p119
    %p126 = scmp.eq.s32.totalorder %s10, 47
    %p127 = por %p125, %p126
    %p128 = scmp.ne.s32.totalorder %s120, %s123
    %p129 = scmp.eq.s32.totalorder %s10, 0
    %p130 = por %p128, %p129
    %p131 = scmp.ne.s32.totalorder %s120, %s123
    %p132 = scmp.eq.s32.totalorder %s15, 47
    %p133 = por %p131, %p132
    %p134 = scmp.ne.s32.totalorder %s123, %s124
    %p135 = scmp.eq.s32.totalorder %s15, 0
    %p136 = por %p134, %p135
    %p137 = scmp.ne.s32.totalorder %s123, %s124
    %p138 = scmp.eq.s32.totalorder %s16, 47
    %p139 = por %p137, %p138
    %p141 = scmp.ne.s32.totalorder %s124, %s140
    %p142 = scmp.eq.s32.totalorder %s16, 0
    %p143 = por %p141, %p142
    %p144 = scmp.le.s32.totalorder 1, %s10
    %p145 = scmp.lt.s32.totalorder %s10, 49
    %p146 = pnand %p144, %p145
    %p147 = pneg %p146
    // Predicated region
    $region9: #{down_forward.6} parent=5 // pred_check
      _
    $region10: #{down_forward.6} parent=5 // pred_check_branch
      %149 = sbr.rel (%p146) target = $region12
    $region11: #{down_forward.6} parent=5 // pred_region
      %s150 = ssub.s32 %s10, 1
      // Predicated region
      $region13: #{down_forward.6} parent=11 // pred_check
        %p151 = pneg %p80
      $region14: #{down_forward.6} parent=11 // pred_check_branch
        %153 = sbr.rel (%p151) target = $region16
      $region15: #{down_forward.6} parent=11 // pred_region
        _
      $region16: #{down_forward.6} parent=11 // pred_fallthru
        _
    $region12: #{down_forward.6} parent=5 // pred_fallthru
      _
    %p154 = scmp.lt.s32.totalorder %s10, 48
    // Predicated region
    $region17: #{down_forward.6} parent=5 // pred_check
      %p155 = pneg %p154
    $region18: #{down_forward.6} parent=5 // pred_check_branch
      %157 = sbr.rel (%p155) target = $region20
    $region19: #{down_forward.6} parent=5 // pred_region
      // Predicated region
      $region21: #{down_forward.6} parent=19 // pred_check
        %p158 = pneg %p53
      $region22: #{down_forward.6} parent=19 // pred_check_branch
        %160 = sbr.rel (%p158) target = $region24
      $region23: #{down_forward.6} parent=19 // pred_region
        %s161 = sadd.s32 %s18, %s19
        %p162 = scmp.lt.s32.totalorder %s17, 1
        %s163 = scalar_select %p162, %s17, 1
        %p164 = scmp.lt.s32.totalorder %s161, 9
        %s165 = scalar_select %p164, %s161, 9
        %s166 = smul.addr %s165, 2
        %s167 = smul.addr %s163, 20
        %s168 = sadd.s32 %s166, %s167
        %s169 = smul.addr %s168, 8
        %s170 = scalar_lea.vmem %s0, %s169
        %s171 = sadd.s32 %s18, %s19
      $region24: #{down_forward.6} parent=19 // pred_fallthru
        _
    $region20: #{down_forward.6} parent=5 // pred_fallthru
      _
    %p172 = scmp.le.s32.totalorder 1, %s10
    %p173 = scmp.lt.s32.totalorder %s10, 49
    %p174 = pnand %p172, %p173
    %p175 = pneg %p174
    // Predicated region
    $region25: #{down_forward.6} parent=5 // pred_check
      _
    $region26: #{down_forward.6} parent=5 // pred_check_branch
      %177 = sbr.rel (%p174) target = $region28
    $region27: #{down_forward.6} parent=5 // pred_region
      %s178 = ssub.s32 %s10, 1
      %s179 = sadd.s32 %s21, %s22
      %p180 = scmp.lt.s32.totalorder %s20, 1
      %s181 = scalar_select %p180, %s20, 1
      %p182 = scmp.lt.s32.totalorder %s179, 9
      %s183 = scalar_select %p182, %s179, 9
      %s184 = smul.addr %s183, 2
      %s185 = smul.addr %s181, 20
      %s186 = sadd.s32 %s184, %s185
      %s187 = smul.addr %s186, 8
      %s188 = scalar_lea.vmem %s0, %s187
      %p189 = pneg %p59
      %p190 = pneg %p56
      %p191 = pneg %p80
      %p192 = pneg %p77
      %p193 = pneg %p108
      %p194 = pneg %p105
      %p195 = scmp.lt.s32.totalorder %s20, 1
      %s196 = scalar_select %p195, %s20, 1
      %p197 = scmp.lt.s32.totalorder %s21, 7
      %s198 = scalar_select %p197, %s21, 7
      %s199 = smul.addr %s196, 8
      %s200 = sadd.s32 %s198, %s199
      %s201 = smul.addr %s200, 8
      %s202 = scalar_lea.vmem %s2, %s201
      %p203 = pneg %p136
      %p204 = pneg %p133
      %p205 = scmp.lt.s32.totalorder %s20, 1
      %s206 = scalar_select %p205, %s20, 1
      %p207 = scmp.lt.s32.totalorder %s21, 7
      %s208 = scalar_select %p207, %s21, 7
      %s209 = smul.addr %s206, 8
      %s210 = sadd.s32 %s208, %s209
      %s211 = smul.addr %s210, 2
      %s212 = scalar_lea.vmem %s3, %s211
      %s213 = sadd.s32 %s21, %s22
      %p214 = scmp.lt.s32.totalorder %s20, 1
      %s215 = scalar_select %p214, %s20, 1
      %p216 = scmp.lt.s32.totalorder %s213, 9
      %s217 = scalar_select %p216, %s213, 9
      %s218 = smul.addr %s217, 2
      %s219 = smul.addr %s215, 20
      %s220 = sadd.s32 %s218, %s219
      %s221 = smul.addr %s220, 8
      %s222 = scalar_lea.vmem %s0, %s221
      %s223 = sadd.s32 %s21, %s22
      %p224 = scmp.lt.s32.totalorder %s20, 1
      %s225 = scalar_select %p224, %s20, 1
      %p226 = scmp.lt.s32.totalorder %s21, 7
      %s227 = scalar_select %p226, %s21, 7
      %s228 = smul.addr %s225, 8
      %s229 = sadd.s32 %s227, %s228
      %s230 = smul.addr %s229, 8
      %s231 = scalar_lea.vmem %s2, %s230
      %p232 = scmp.lt.s32.totalorder %s20, 1
      %s233 = scalar_select %p232, %s20, 1
      %p234 = scmp.lt.s32.totalorder %s21, 7
      %s235 = scalar_select %p234, %s21, 7
      %s236 = smul.addr %s233, 8
      %s237 = sadd.s32 %s235, %s236
      %s238 = smul.addr %s237, 2
      %s239 = scalar_lea.vmem %s3, %s238
      %p241 = scmp.eq.s32.totalorder %s22, 0
      // Predicated region
      $region29: #{down_forward.6} parent=27 // pred_check
        %p242 = pneg %p241
      $region30: #{down_forward.6} parent=27 // pred_check_branch
        %244 = sbr.rel (%p242) target = $region32
      $region31: #{down_forward.6} parent=27 // pred_region
        %245 = vst [vmem:[%s231] sm:$0xff] 0.0
      $region32: #{down_forward.6} parent=27 // pred_fallthru
        _
      %v246 = vld [vmem:[%s222] sm:$0xff]
      %v247 = vld [vmem:[%s222 + $0x8] sm:$0x3]
      %v248 = vpack.c.bf16 %v247, %v246
      %s249 = smul.u32 %s22, 48
      %s250 = smul.addr %s249, 4
      %s251 = scalar_lea.vmem %s1, %s250
      %v252 = vld [vmem:[%s251] sm:$0xf]
      %v253 = vld [vmem:[%s251 + $0x4] sm:$0xf]
      %v254 = vld [vmem:[%s251 + $0x8] sm:$0xf]
      %v255 = vld [vmem:[%s251 + $0xc] sm:$0xf]
      %v256 = vld [vmem:[%s251 + $0x10] sm:$0xf]
      %v257 = vld [vmem:[%s251 + $0x14] sm:$0xf]
      %v258 = vld [vmem:[%s251 + $0x18] sm:$0xf]
      %v259 = vld [vmem:[%s251 + $0x1c] sm:$0xf]
      %v260 = vld [vmem:[%s251 + $0x20] sm:$0xf]
      %v261 = vld [vmem:[%s251 + $0x24] sm:$0xf]
      %v262 = vld [vmem:[%s251 + $0x28] sm:$0xf]
      %v263 = vld [vmem:[%s251 + $0x2c] sm:$0xf]
      %v264 = vld [vmem:[%s251 + $0x30] sm:$0xf]
      %v265 = vld [vmem:[%s251 + $0x34] sm:$0xf]
      %v266 = vld [vmem:[%s251 + $0x38] sm:$0xf]
      %v267 = vld [vmem:[%s251 + $0x3c] sm:$0xf]
      %v268 = vld [vmem:[%s251 + $0x40] sm:$0xf]
      %v269 = vld [vmem:[%s251 + $0x44] sm:$0xf]
      %v270 = vld [vmem:[%s251 + $0x48] sm:$0xf]
      %v271 = vld [vmem:[%s251 + $0x4c] sm:$0xf]
      %v272 = vld [vmem:[%s251 + $0x50] sm:$0xf]
      %v273 = vld [vmem:[%s251 + $0x54] sm:$0xf]
      %v274 = vld [vmem:[%s251 + $0x58] sm:$0xf]
      %v275 = vld [vmem:[%s251 + $0x5c] sm:$0xf]
      %v276 = vld [vmem:[%s251 + $0x60] sm:$0xf]
      %v277 = vld [vmem:[%s251 + $0x64] sm:$0xf]
      %v278 = vld [vmem:[%s251 + $0x68] sm:$0xf]
      %v279 = vld [vmem:[%s251 + $0x6c] sm:$0xf]
      %v280 = vld [vmem:[%s251 + $0x70] sm:$0xf]
      %v281 = vld [vmem:[%s251 + $0x74] sm:$0xf]
      %v282 = vld [vmem:[%s251 + $0x78] sm:$0xf]
      %v283 = vld [vmem:[%s251 + $0x7c] sm:$0xf]
      %v284 = vld [vmem:[%s251 + $0x80] sm:$0xf]
      %v285 = vld [vmem:[%s251 + $0x84] sm:$0xf]
      %v286 = vld [vmem:[%s251 + $0x88] sm:$0xf]
      %v287 = vld [vmem:[%s251 + $0x8c] sm:$0xf]
      %v288 = vld [vmem:[%s251 + $0x90] sm:$0xf]
      %v289 = vld [vmem:[%s251 + $0x94] sm:$0xf]
      %v290 = vld [vmem:[%s251 + $0x98] sm:$0xf]
      %v291 = vld [vmem:[%s251 + $0x9c] sm:$0xf]
      %v292 = vld [vmem:[%s251 + $0xa0] sm:$0xf]
      %v293 = vld [vmem:[%s251 + $0xa4] sm:$0xf]
      %v294 = vld [vmem:[%s251 + $0xa8] sm:$0xf]
      %v295 = vld [vmem:[%s251 + $0xac] sm:$0xf]
      %v296 = vld [vmem:[%s251 + $0xb0] sm:$0xf]
      %v297 = vld [vmem:[%s251 + $0xb4] sm:$0xf]
      %v298 = vld [vmem:[%s251 + $0xb8] sm:$0xf]
      %v299 = vld [vmem:[%s251 + $0xbc] sm:$0xf]
      %v301 = vshrl.u32 %v248, 16
      %v303 = vshll.u32 %v248, 16
      %v305 = vrot.slane %v303, 1
      %v306 = vor.u32 %v301, %v305
      %v324 = vunpack.c.l.b16 %v268
      %v325 = vunpack.c.l.b16 %v269
      %v326 = vunpack.c.l.b16 %v270
      %v327 = vunpack.c.l.b16 %v271
      %v328 = vunpack.c.l.b16 %v272
      %v329 = vunpack.c.l.b16 %v273
      %v330 = vunpack.c.l.b16 %v274
      %v331 = vunpack.c.l.b16 %v275
      %v332 = vunpack.c.l.b16 %v276
      %v333 = vunpack.c.l.b16 %v277
      %v334 = vunpack.c.l.b16 %v278
      %v335 = vunpack.c.l.b16 %v279
      %v336 = vunpack.c.l.b16 %v280
      %v337 = vunpack.c.l.b16 %v281
      %v338 = vunpack.c.l.b16 %v282
      %v339 = vunpack.c.l.b16 %v283
      %v340 = vpack.c.b16 %v325, %v324
      %v341 = vpack.c.b16 %v327, %v326
      %v342 = vpack.c.b16 %v329, %v328
      %v343 = vpack.c.b16 %v331, %v330
      %v344 = vpack.c.b16 %v333, %v332
      %v345 = vpack.c.b16 %v335, %v334
      %v346 = vpack.c.b16 %v337, %v336
      %v347 = vpack.c.b16 %v339, %v338
      %356 = vmatprep.subr.bf16.mxu0 0
      %357 = vmatpush1.bf16.msra.mxu0 %v340
      %358 = vmatprep.subr.bf16.mxu0 0
      %359 = vmatpush1.bf16.msra.mxu0 %v341
      %360 = vmatprep.subr.bf16.mxu0 0
      %361 = vmatpush1.bf16.msra.mxu0 %v342
      %362 = vmatprep.subr.bf16.mxu0 0
      %363 = vmatpush1.bf16.msra.mxu0 %v343
      %364 = vmatprep.subr.bf16.mxu0 0
      %365 = vmatpush1.bf16.msra.mxu0 %v344
      %366 = vmatprep.subr.bf16.mxu0 0
      %367 = vmatpush1.bf16.msra.mxu0 %v345
      %368 = vmatprep.subr.bf16.mxu0 0
      %369 = vmatpush1.bf16.msra.mxu0 %v346
      %370 = vmatprep.subr.bf16.mxu0 0
      %371 = vmatpush1.bf16.msra.mxu0 %v347
      %372 = vmatprep.subr.bf16.mxu0 0
      %373 = vmatpush1.bf16.msra.mxu0 0
      %374 = vmatprep.subr.bf16.mxu0 0
      %375 = vmatpush1.bf16.msra.mxu0 0
      %376 = vmatprep.subr.bf16.mxu0 0
      %377 = vmatpush1.bf16.msra.mxu0 0
      %378 = vmatprep.subr.bf16.mxu0 0
      %379 = vmatpush1.bf16.msra.mxu0 0
      %380 = vmatprep.subr.bf16.mxu0 0
      %381 = vmatpush1.bf16.msra.mxu0 0
      %382 = vmatprep.subr.bf16.mxu0 0
      %383 = vmatpush1.bf16.msra.mxu0 0
      %384 = vmatprep.subr.bf16.mxu0 0
      %385 = vmatpush1.bf16.msra.mxu0 0
      %386 = vmatprep.subr.bf16.mxu0 0
      %387 = vmatpush1.bf16.msra.mxu0 0
      %388 = vmatprep.mubr.bf16.mxu0 0
      %389 = vmatmul.mubr.bf16.gmra.mrb[0].mxu0 %v306
      %v390 = vpop.f32.mrb[0].mxu0
      %v391 = vadd.f32 0.0, %v390
      %v392 = vpop.f32.mrb[0].mxu0
      %v393 = vpop.f32.mrb[0].mxu0
      %v394 = vpop.f32.mrb[0].mxu0
      %395 = vdwg.mxu0
      %v412 = vunpack.c.l.b16 %v252
      %v413 = vunpack.c.l.b16 %v253
      %v414 = vunpack.c.l.b16 %v254
      %v415 = vunpack.c.l.b16 %v255
      %v416 = vunpack.c.l.b16 %v256
      %v417 = vunpack.c.l.b16 %v257
      %v418 = vunpack.c.l.b16 %v258
      %v419 = vunpack.c.l.b16 %v259
      %v420 = vunpack.c.l.b16 %v260
      %v421 = vunpack.c.l.b16 %v261
      %v422 = vunpack.c.l.b16 %v262
      %v423 = vunpack.c.l.b16 %v263
      %v424 = vunpack.c.l.b16 %v264
      %v425 = vunpack.c.l.b16 %v265
      %v426 = vunpack.c.l.b16 %v266
      %v427 = vunpack.c.l.b16 %v267
      %v428 = vpack.c.b16 %v413, %v412
      %v429 = vpack.c.b16 %v415, %v414
      %v430 = vpack.c.b16 %v417, %v416
      %v431 = vpack.c.b16 %v419, %v418
      %v432 = vpack.c.b16 %v421, %v420
      %v433 = vpack.c.b16 %v423, %v422
      %v434 = vpack.c.b16 %v425, %v424
      %v435 = vpack.c.b16 %v427, %v426
      %444 = vmatprep.subr.bf16.mxu0 0
      %445 = vmatpush1.bf16.msra.mxu0 %v428
      %446 = vmatprep.subr.bf16.mxu0 0
      %447 = vmatpush1.bf16.msra.mxu0 %v429
      %448 = vmatprep.subr.bf16.mxu0 0
      %449 = vmatpush1.bf16.msra.mxu0 %v430
      %450 = vmatprep.subr.bf16.mxu0 0
      %451 = vmatpush1.bf16.msra.mxu0 %v431
      %452 = vmatprep.subr.bf16.mxu0 0
      %453 = vmatpush1.bf16.msra.mxu0 %v432
      %454 = vmatprep.subr.bf16.mxu0 0
      %455 = vmatpush1.bf16.msra.mxu0 %v433
      %456 = vmatprep.subr.bf16.mxu0 0
      %457 = vmatpush1.bf16.msra.mxu0 %v434
      %458 = vmatprep.subr.bf16.mxu0 0
      %459 = vmatpush1.bf16.msra.mxu0 %v435
      %460 = vmatprep.subr.bf16.mxu0 0
      %461 = vmatpush1.bf16.msra.mxu0 0
      %462 = vmatprep.subr.bf16.mxu0 0
      %463 = vmatpush1.bf16.msra.mxu0 0
      %464 = vmatprep.subr.bf16.mxu0 0
      %465 = vmatpush1.bf16.msra.mxu0 0
      %466 = vmatprep.subr.bf16.mxu0 0
      %467 = vmatpush1.bf16.msra.mxu0 0
      %468 = vmatprep.subr.bf16.mxu0 0
      %469 = vmatpush1.bf16.msra.mxu0 0
      %470 = vmatprep.subr.bf16.mxu0 0
      %471 = vmatpush1.bf16.msra.mxu0 0
      %472 = vmatprep.subr.bf16.mxu0 0
      %473 = vmatpush1.bf16.msra.mxu0 0
      %474 = vmatprep.subr.bf16.mxu0 0
      %475 = vmatpush1.bf16.msra.mxu0 0
      %476 = vmatprep.mubr.bf16.mxu0 0
      %477 = vmatmul.mubr.bf16.gmra.mrb[0].mxu0 %v248
      %v478 = vpop.f32.mrb[0].mxu0
      %v479 = vadd.f32 %v391, %v478
      %v480 = vpop.f32.mrb[0].mxu0
      %v481 = vpop.f32.mrb[0].mxu0
      %v482 = vpop.f32.mrb[0].mxu0
      %483 = vdwg.mxu0
      %v485 = vrot.slane %v248, 1
      %v503 = vunpack.c.l.b16 %v284
      %v504 = vunpack.c.l.b16 %v285
      %v505 = vunpack.c.l.b16 %v286
      %v506 = vunpack.c.l.b16 %v287
      %v507 = vunpack.c.l.b16 %v288
      %v508 = vunpack.c.l.b16 %v289
      %v509 = vunpack.c.l.b16 %v290
      %v510 = vunpack.c.l.b16 %v291
      %v511 = vunpack.c.l.b16 %v292
      %v512 = vunpack.c.l.b16 %v293
      %v513 = vunpack.c.l.b16 %v294
      %v514 = vunpack.c.l.b16 %v295
      %v515 = vunpack.c.l.b16 %v296
      %v516 = vunpack.c.l.b16 %v297
      %v517 = vunpack.c.l.b16 %v298
      %v518 = vunpack.c.l.b16 %v299
      %v519 = vpack.c.b16 %v504, %v503
      %v520 = vpack.c.b16 %v506, %v505
      %v521 = vpack.c.b16 %v508, %v507
      %v522 = vpack.c.b16 %v510, %v509
      %v523 = vpack.c.b16 %v512, %v511
      %v524 = vpack.c.b16 %v514, %v513
      %v525 = vpack.c.b16 %v516, %v515
      %v526 = vpack.c.b16 %v518, %v517
      %535 = vmatprep.subr.bf16.mxu0 0
      %536 = vmatpush1.bf16.msra.mxu0 %v519
      %537 = vmatprep.subr.bf16.mxu0 0
      %538 = vmatpush1.bf16.msra.mxu0 %v520
      %539 = vmatprep.subr.bf16.mxu0 0
      %540 = vmatpush1.bf16.msra.mxu0 %v521
      %541 = vmatprep.subr.bf16.mxu0 0
      %542 = vmatpush1.bf16.msra.mxu0 %v522
      %543 = vmatprep.subr.bf16.mxu0 0
      %544 = vmatpush1.bf16.msra.mxu0 %v523
      %545 = vmatprep.subr.bf16.mxu0 0
      %546 = vmatpush1.bf16.msra.mxu0 %v524
      %547 = vmatprep.subr.bf16.mxu0 0
      %548 = vmatpush1.bf16.msra.mxu0 %v525
      %549 = vmatprep.subr.bf16.mxu0 0
      %550 = vmatpush1.bf16.msra.mxu0 %v526
      %551 = vmatprep.subr.bf16.mxu0 0
      %552 = vmatpush1.bf16.msra.mxu0 0
      %553 = vmatprep.subr.bf16.mxu0 0
      %554 = vmatpush1.bf16.msra.mxu0 0
      %555 = vmatprep.subr.bf16.mxu0 0
      %556 = vmatpush1.bf16.msra.mxu0 0
      %557 = vmatprep.subr.bf16.mxu0 0
      %558 = vmatpush1.bf16.msra.mxu0 0
      %559 = vmatprep.subr.bf16.mxu0 0
      %560 = vmatpush1.bf16.msra.mxu0 0
      %561 = vmatprep.subr.bf16.mxu0 0
      %562 = vmatpush1.bf16.msra.mxu0 0
      %563 = vmatprep.subr.bf16.mxu0 0
      %564 = vmatpush1.bf16.msra.mxu0 0
      %565 = vmatprep.subr.bf16.mxu0 0
      %566 = vmatpush1.bf16.msra.mxu0 0
      %567 = vmatprep.mubr.bf16.mxu0 0
      %568 = vmatmul.mubr.bf16.gmra.mrb[0].mxu0 %v485
      %v569 = vpop.f32.mrb[0].mxu0
      %v570 = vadd.f32 0.0, %v569
      %v571 = vpop.f32.mrb[0].mxu0
      %v572 = vpop.f32.mrb[0].mxu0
      %v573 = vpop.f32.mrb[0].mxu0
      %574 = vdwg.mxu0
      %v575 = vadd.f32 %v479, %v570
      %v576 = vld [vmem:[%s231] sm:$0xff]
      %v577 = vadd.f32 %v576, %v575
      %578 = vst [vmem:[%s231] sm:$0xff] %v577
      %p579 = scmp.eq.s32.totalorder %s22, 2
      // Predicated region
      $region33: #{down_forward.6} parent=27 // pred_check
        %p580 = pneg %p579
      $region34: #{down_forward.6} parent=27 // pred_check_branch
        %582 = sbr.rel (%p580) target = $region36
      $region35: #{down_forward.6} parent=27 // pred_region
        %v583 = vld [vmem:[%s231] sm:$0xff]
        %v584 = vrot.slane %v583, 4
        %v585 = vadd.f32 %v583, %v584
        %v586 = vrot.slane %v585, 2
        %v587 = vadd.f32 %v585, %v586
        %v588 = vrot.slane %v587, 1
        %v589 = vadd.f32 %v587, %v588
        %v590 = vmul.f32 %v583, %v583
        %v591 = vrot.slane %v590, 4
        %v592 = vadd.f32 %v590, %v591
        %v593 = vrot.slane %v592, 2
        %v594 = vadd.f32 %v592, %v593
        %v595 = vrot.slane %v594, 1
        %v596 = vadd.f32 %v594, %v595
        %vm597 = vcmask 1040384
        %v598 = vsel %vm597, %v589, %v596
        %599 = vst [vmem:[%s239] sm:$0x3] %v598
      $region36: #{down_forward.6} parent=27 // pred_fallthru
        _
      %p600 = scmp.lt.s32.totalorder %s20, 1
      %s601 = scalar_select %p600, %s20, 1
      %p602 = scmp.lt.s32.totalorder %s21, 7
      %s603 = scalar_select %p602, %s21, 7
      %s604 = smul.addr %s601, 8
      %s605 = sadd.s32 %s603, %s604
      %s606 = smul.addr %s605, 8
      %s607 = scalar_lea.vmem %s2, %s606
      %p608 = scmp.lt.s32.totalorder %s20, 1
      %s609 = scalar_select %p608, %s20, 1
      %p610 = scmp.lt.s32.totalorder %s21, 7
      %s611 = scalar_select %p610, %s21, 7
      %s612 = smul.addr %s609, 8
      %s613 = sadd.s32 %s611, %s612
      %s614 = smul.addr %s613, 2
      %s615 = scalar_lea.vmem %s3, %s614
      // Predicated region
      $region37: #{down_forward.6} parent=27 // pred_check
        %p616 = pneg %p105
      $region38: #{down_forward.6} parent=27 // pred_check_branch
        %618 = sbr.rel (%p616) target = $region40
      $region39: #{down_forward.6} parent=27 // pred_region
        _
      $region40: #{down_forward.6} parent=27 // pred_fallthru
        _
      // Predicated region
      $region41: #{down_forward.6} parent=27 // pred_check
        %p619 = pneg %p133
      $region42: #{down_forward.6} parent=27 // pred_check_branch
        %621 = sbr.rel (%p619) target = $region44
      $region43: #{down_forward.6} parent=27 // pred_region
        _
      $region44: #{down_forward.6} parent=27 // pred_fallthru
        _
    $region28: #{down_forward.6} parent=5 // pred_fallthru
      _
    %p622 = scmp.le.s32.totalorder 2, %s10
    // Predicated region
    $region45: #{down_forward.6} parent=5 // pred_check
      %p623 = pneg %p622
    $region46: #{down_forward.6} parent=5 // pred_check_branch
      %625 = sbr.rel (%p623) target = $region48
    $region47: #{down_forward.6} parent=5 // pred_region
      %s626 = ssub.s32 %s10, 2
      // Predicated region
      $region49: #{down_forward.6} parent=47 // pred_check
        %p627 = pneg %p111
      $region50: #{down_forward.6} parent=47 // pred_check_branch
        %629 = sbr.rel (%p627) target = $region52
      $region51: #{down_forward.6} parent=47 // pred_region
        %p630 = scmp.lt.s32.totalorder %s23, 1
        %s631 = scalar_select %p630, %s23, 1
        %p632 = scmp.lt.s32.totalorder %s24, 7
        %s633 = scalar_select %p632, %s24, 7
        %s634 = smul.addr %s631, 8
        %s635 = sadd.s32 %s633, %s634
        %s636 = smul.addr %s635, 8
        %s637 = scalar_lea.vmem %s2, %s636
      $region52: #{down_forward.6} parent=47 // pred_fallthru
        _
      // Predicated region
      $region53: #{down_forward.6} parent=47 // pred_check
        %p638 = pneg %p139
      $region54: #{down_forward.6} parent=47 // pred_check_branch
        %640 = sbr.rel (%p638) target = $region56
      $region55: #{down_forward.6} parent=47 // pred_region
        %p641 = scmp.lt.s32.totalorder %s23, 1
        %s642 = scalar_select %p641, %s23, 1
        %p643 = scmp.lt.s32.totalorder %s24, 7
        %s644 = scalar_select %p643, %s24, 7
        %s645 = smul.addr %s642, 8
        %s646 = sadd.s32 %s644, %s645
        %s647 = smul.addr %s646, 2
        %s648 = scalar_lea.vmem %s3, %s647
      $region56: #{down_forward.6} parent=47 // pred_fallthru
        _
    $region48: #{down_forward.6} parent=5 // pred_fallthru
      _
  $region6: #{down_forward.6} parent=0 // loop_footer
    %s14 = sadd.s32 1, %s10
  $region7: #{down_forward.6} parent=0 // loop_footer_branch
    %9 = sbr.rel target = $region3
  $region8: #{down_forward.6} parent=0 // loop_exit
    _

</llo_original>
